<compile_context>
chip_gen: v7x
topology: tpu7x:2x2x1
jax: 0.10.0
libtpu: 0.0.40
codegen_flags: <defaults>
</compile_context>

<pallas_src>
import functools
import numpy as np
import jax
import jax.numpy as jnp
from jax.experimental import pallas as pl
from jax.experimental.pallas import tpu as pltpu

# ----------------------------- configuration -------------------------------
IMG_C = 3          # input image channels
IMG_HW = 16        # input spatial size
CLIP_PATCH = 8     # CLIP synthetic patch size -> 2x2 = 4 tokens
CLIP_DIM = 32      # CLIP embedding dim
VAE_PATCH = 4      # VAE downsample factor -> 4x4 latent
LAT_C = 4          # latent channels
LAT_TOK = (IMG_HW // VAE_PATCH) ** 2            # 16 latent tokens
LAT_N = LAT_TOK * LAT_C                         # 64 flattened latent features
VAE_PDIM = VAE_PATCH * VAE_PATCH * IMG_C        # 48 per-patch features
T_EMB_DIM = 32
HIDDEN = 128
MODEL_IN = LAT_N + LAT_N + CLIP_DIM + T_EMB_DIM  # x_t + mask_emb + cond + t = 192
TRAIN_STEPS = 1000
BETA_MIN, BETA_MAX = 1e-4, 2e-2
N_COEF = 9         # per-row schedule coefficients packed into one block

_CPARAMS = pltpu.CompilerParams(dimension_semantics=("arbitrary",))


# ------------------------------ Pallas kernel --------------------------------
def _approx_std_normal_cdf(x):
    return 0.5 * (1.0 + jnp.tanh(np.sqrt(2.0 / np.pi) * (x + 0.044715 * x ** 3)))


def _fused_forward_kernel(px_ref, pm_ref, vw_ref, vb_ref, ex_ref, em_ref,
                          noise_ref, mp_ref, temb_ref,
                          cw_ref, cb_ref, w1_ref, b1_ref, w2_ref, b2_ref,
                          c_ref, o_ref):
    """VAE encode (image+mask) + q_sample + CLIP cond + denoiser MLP +
    RESCALED_KL VB loss + batch mean, all in one VMEM-resident pass."""
    f32, bf16 = jnp.float32, jnp.bfloat16

    # --- vae.encode(x).sample() / vae.encode(mask).sample() ---
    # Per-patch projection expressed as one block-diagonal matmul so the
    # latent comes out directly in (B, LAT_N) layout (no reshape needed).
    def vae_sample(p_ref, eps_ref):
        moments = jnp.dot(p_ref[...].astype(bf16), vw_ref[...],
                          preferred_element_type=f32) + vb_ref[...]
        mean = moments[:, 0:LAT_N]
        logvar = jnp.clip(moments[:, LAT_N:2 * LAT_N], -30.0, 20.0)
        return mean + jnp.exp(0.5 * logvar) * eps_ref[...]

    x0 = vae_sample(px_ref, ex_ref)          # (B, LAT_N)
    mask_emb = vae_sample(pm_ref, em_ref)    # (B, LAT_N)
    noise = noise_ref[...]

    # --- q_sample(x0, t) ---
    sqrt_ac = c_ref[:, 0:1]
    sqrt_1m_ac = c_ref[:, 1:2]
    x_t = sqrt_ac * x0 + sqrt_1m_ac * noise

    # --- clip.encode_image(x) conditioning: token-mean commutes with the
    #     linear patch embedding, and repeat(1,2,1) (text=None) is a no-op
    #     under the mean, so cond = mean_patches @ W_clip + b_clip. ---
    cond = jnp.dot(mp_ref[...].astype(bf16), cw_ref[...],
                   preferred_element_type=f32) + cb_ref[...]

    # --- denoiser MLP: h = silu([x_t, mask_emb, cond, t_emb] @ W1 + b1) ---
    # concat avoided: W1 row-sliced into 4 small MXU dots accumulated in f32.
    h = jnp.dot(x_t.astype(bf16), w1_ref[0:LAT_N, :],
                preferred_element_type=f32)
    h += jnp.dot(mask_emb.astype(bf16), w1_ref[LAT_N:2 * LAT_N, :],
                 preferred_element_type=f32)
    h += jnp.dot(cond.astype(bf16), w1_ref[2 * LAT_N:2 * LAT_N + CLIP_DIM, :],
                 preferred_element_type=f32)
    h += jnp.dot(temb_ref[...].astype(bf16),
                 w1_ref[2 * LAT_N + CLIP_DIM:MODEL_IN, :],
                 preferred_element_type=f32)
    h += b1_ref[...]
    h = h * jax.nn.sigmoid(h)                                    # SiLU (f32)

    out = jnp.dot(h.astype(bf16), w2_ref[...],
                  preferred_element_type=f32) + b2_ref[...]       # (B, 2*LAT_N)
    eps_pred = out[:, 0:LAT_N]      # LEARNED_RANGE -> 2x channels
    v_pred = out[:, LAT_N:2 * LAT_N]

    # --- RESCALED_KL variational-bound loss ---
    sqrt_recip_ac = c_ref[:, 2:3]
    sqrt_recipm1_ac = c_ref[:, 3:4]
    post_c1 = c_ref[:, 4:5]
    post_c2 = c_ref[:, 5:6]
    post_logvar = c_ref[:, 6:7]
    log_beta = c_ref[:, 7:8]
    t_is_zero = c_ref[:, 8:9]

    # true posterior q(x_{t-1} | x_t, x_0)
    true_mean = post_c1 * x0 + post_c2 * x_t
    true_logvar = post_logvar                       # (B, 1) broadcast

    # p_theta: EPSILON mean parameterization + LEARNED_RANGE variance
    pred_xstart = sqrt_recip_ac * x_t - sqrt_recipm1_ac * eps_pred  # no clipping
    model_mean = post_c1 * pred_xstart + post_c2 * x_t
    frac = (v_pred + 1.0) * 0.5
    model_logvar = frac * log_beta + (1.0 - frac) * post_logvar

    # exp(-0.5*model_logvar) computed once, squared for inv_var; the remaining
    # exp() only touches the per-row (B,1) true_logvar column.
    inv_stdv = jnp.exp(-0.5 * model_logvar)
    inv_var = inv_stdv * inv_stdv
    exp_true_lv = jnp.exp(true_logvar)              # (B, 1): cheap

    # KL(q || p) in bits (normal_kl + mean_flat / log 2)
    kl = 0.5 * (-1.0 + model_logvar - true_logvar
                + exp_true_lv * inv_var
                + (true_mean - model_mean) ** 2 * inv_var)
    kl = jnp.mean(kl, axis=1, keepdims=True) * (1.0 / np.log(2.0))

    # discretized Gaussian decoder NLL (used when t == 0)
    centered = x0 - model_mean
    plus_in = inv_stdv * (centered + 1.0 / 255.0)
    min_in = inv_stdv * (centered - 1.0 / 255.0)
    cdf_plus = _approx_std_normal_cdf(plus_in)
    cdf_min = _approx_std_normal_cdf(min_in)
    log_cdf_plus = jnp.log(jnp.maximum(cdf_plus, 1e-12))
    log_one_minus_cdf_min = jnp.log(jnp.maximum(1.0 - cdf_min, 1e-12))
    cdf_delta = cdf_plus - cdf_min
    log_probs = jnp.where(
        x0 < -0.999, log_cdf_plus,
        jnp.where(x0 > 0.999, log_one_minus_cdf_min,
                  jnp.log(jnp.maximum(cdf_delta, 1e-12))))
    decoder_nll = -jnp.mean(log_probs, axis=1, keepdims=True) * (1.0 / np.log(2.0))

    vb = jnp.where(t_is_zero > 0.5, decoder_nll, kl)
    vb = vb * float(TRAIN_STEPS)                   # LossType.RESCALED_KL

    # batch mean inside the kernel; emit a full (8,128) lane-dense slab.
    loss = jnp.sum(vb) * (1.0 / vb.shape[0])
    o_ref[...] = loss + jnp.zeros_like(o_ref)


# ------------------------------ call wrapper ---------------------------------
def pallas_fused_forward(px, pm, vae_wbig, vae_bbig, eps_x, eps_m, noise,
                         mean_patches, t_emb, clip_w, clip_b,
                         w1, b1, w2, b2, coefs):
    args = (px, pm, vae_wbig, vae_bbig.reshape(1, 2 * LAT_N),
            eps_x, eps_m, noise, mean_patches, t_emb,
            clip_w, clip_b.reshape(1, CLIP_DIM),
            w1, b1.reshape(1, HIDDEN),
            w2, b2.reshape(1, 2 * LAT_N),
            coefs)
    in_specs = [pl.BlockSpec(a.shape, lambda i: (0, 0)) for a in args]
    out = pl.pallas_call(
        _fused_forward_kernel,
        grid=(1,),
        in_specs=in_specs,
        out_specs=pl.BlockSpec((8, 128), lambda i: (0, 0)),
        out_shape=jax.ShapeDtypeStruct((8, 128), jnp.float32),
        compiler_params=_CPARAMS,
    )(*args)
    return out[0, 0]


# ------------------------------- JAX glue -------------------------------------
def patchify(x_nhwc, p):
    B, H, W, C = x_nhwc.shape
    x = x_nhwc.reshape(B, H // p, p, W // p, p, C)
    x = x.transpose(0, 1, 3, 2, 4, 5)
    return x.reshape(B, (H // p) * (W // p), p * p * C)


def timestep_embedding(t, dim):
    half = dim // 2
    freqs = jnp.exp(-np.log(10000.0) * jnp.arange(half, dtype=jnp.float32) / half)
    args = t.astype(jnp.float32)[:, None] * freqs[None, :]
    return jnp.concatenate([jnp.cos(args), jnp.sin(args)], axis=-1)


def make_schedule(train_steps, beta_min, beta_max):
    # Matches the module: np.linspace(beta_max, beta_min, train_steps) (descending).
    betas = np.linspace(beta_max, beta_min, train_steps, dtype=np.float64)
    alphas = 1.0 - betas
    ac = np.cumprod(alphas)
    ac_prev = np.append(1.0, ac[:-1])
    post_var = betas * (1.0 - ac_prev) / (1.0 - ac)
    post_logvar = np.log(np.append(post_var[1], post_var[1:]))
    sched = dict(
        sqrt_ac=np.sqrt(ac),
        sqrt_1m_ac=np.sqrt(1.0 - ac),
        sqrt_recip_ac=np.sqrt(1.0 / ac),
        sqrt_recipm1_ac=np.sqrt(1.0 / ac - 1.0),
        post_c1=betas * np.sqrt(ac_prev) / (1.0 - ac),
        post_c2=(1.0 - ac_prev) * np.sqrt(alphas) / (1.0 - ac),
        post_logvar=post_logvar,
        log_betas=np.log(betas),
    )
    return {k: jnp.asarray(v, jnp.float32) for k, v in sched.items()}


def make_params(key):
    ks = jax.random.split(key, 4)

    def w(k, shape, scale=0.02):
        # weights stored bf16 (MXU operands); biases / elementwise stay f32.
        return (scale * jax.random.normal(k, shape, jnp.float32)).astype(jnp.bfloat16)

    return dict(
        clip_w=w(ks[0], (CLIP_PATCH * CLIP_PATCH * IMG_C, CLIP_DIM)),
        clip_b=jnp.zeros((CLIP_DIM,), jnp.float32),
        vae_w=w(ks[1], (VAE_PDIM, 2 * LAT_C)),
        vae_b=jnp.zeros((2 * LAT_C,), jnp.float32),
        mlp_w1=w(ks[2], (MODEL_IN, HIDDEN)),
        mlp_b1=jnp.zeros((HIDDEN,), jnp.float32),
        mlp_w2=w(ks[3], (HIDDEN, 2 * LAT_N)),
        mlp_b2=jnp.zeros((2 * LAT_N,), jnp.float32),
    )


def make_vae_block_diag(vae_w, vae_b):
    """Per-patch (48 -> 8) VAE projection as a block-diagonal (768 -> 128)
    matmul: first 64 output columns are per-token means, last 64 log-vars.
    Mathematically identical to applying vae_w to every patch row."""
    wm = vae_w[:, :LAT_C].astype(jnp.float32)      # (48, 4)
    wl = vae_w[:, LAT_C:].astype(jnp.float32)      # (48, 4)
    eye = jnp.eye(LAT_TOK, dtype=jnp.float32)      # (16, 16)
    big_m = jnp.einsum('ij,pc->ipjc', eye, wm).reshape(LAT_TOK * VAE_PDIM,
                                                       LAT_TOK * LAT_C)
    big_l = jnp.einsum('ij,pc->ipjc', eye, wl).reshape(LAT_TOK * VAE_PDIM,
                                                       LAT_TOK * LAT_C)
    wbig = jnp.concatenate([big_m, big_l], axis=1).astype(jnp.bfloat16)  # (768,128)
    bbig = jnp.concatenate([jnp.tile(vae_b[:LAT_C], LAT_TOK),
                            jnp.tile(vae_b[LAT_C:], LAT_TOK)])           # (128,)
    return wbig, bbig


def diffusion_forward(params, sched, x_nchw, mask_nchw, t, noise_keys):
    """Equivalent of Diffusion.forward with text=None; returns scalar loss."""
    B = x_nchw.shape[0]
    x_nhwc = jnp.transpose(x_nchw, (0, 2, 3, 1))
    mask_nhwc = jnp.transpose(mask_nchw, (0, 2, 3, 1))
    k_vx, k_vm, k_noise = noise_keys

    # --- clip.encode_image(x): token-mean of the patch embedding is computed
    #     inside the fused kernel; only the (B, 192) patch-mean is prepared
    #     here (the repeat(1,2,1) of the text=None path is a no-op under it).
    mean_patches = jnp.mean(patchify(x_nhwc, CLIP_PATCH), axis=1)    # (B, 192)

    # --- vae.encode(x/mask): per-patch rows flattened token-major so the
    #     block-diagonal projection inside the kernel reproduces the per-patch
    #     matmul exactly (constant-folded under jit).
    px = patchify(x_nhwc, VAE_PATCH).reshape(B, LAT_TOK * VAE_PDIM)   # (B, 768)
    pm = patchify(mask_nhwc, VAE_PATCH).reshape(B, LAT_TOK * VAE_PDIM)
    vae_wbig, vae_bbig = make_vae_block_diag(params["vae_w"], params["vae_b"])
    eps_x = jax.random.normal(k_vx, (B, LAT_N), jnp.float32)
    eps_m = jax.random.normal(k_vm, (B, LAT_N), jnp.float32)

    # --- diffusion.training_losses inputs ---
    noise = jax.random.normal(k_noise, (B, LAT_N), jnp.float32)
    t_emb = timestep_embedding(t, T_EMB_DIM)
    coefs = jnp.stack([
        sched["sqrt_ac"][t],
        sched["sqrt_1m_ac"][t],
        sched["sqrt_recip_ac"][t],
        sched["sqrt_recipm1_ac"][t],
        sched["post_c1"][t],
        sched["post_c2"][t],
        sched["post_logvar"][t],
        sched["log_betas"][t],
        (t == 0).astype(jnp.float32),
    ], axis=1)                                                       # (B, 9)

    # --- everything fused in ONE pallas_call ---
    return pallas_fused_forward(px, pm, vae_wbig, vae_bbig, eps_x, eps_m,
                                noise, mean_patches, t_emb,
                                params["clip_w"], params["clip_b"],
                                params["mlp_w1"], params["mlp_b1"],
                                params["mlp_w2"], params["mlp_b2"],
                                coefs)                               # scalar


# --------------------------------- main ---------------------------------------
if __name__ == "__main__":
    root = jax.random.PRNGKey(0)
    k_param, k_x, k_mask, k_vx, k_vm, k_noise = jax.random.split(root, 6)

    params = make_params(k_param)
    sched = make_schedule(TRAIN_STEPS, BETA_MIN, BETA_MAX)

    x = jax.random.normal(k_x, (2, IMG_C, IMG_HW, IMG_HW), jnp.float32)   # NCHW
    mask = (jax.random.uniform(k_mask, (2, IMG_C, IMG_HW, IMG_HW)) > 0.5
            ).astype(jnp.float32)                                         # NCHW
    t = jnp.array([0, 500], dtype=jnp.int32)   # exercise decoder-NLL and KL paths

    fwd = jax.jit(functools.partial(diffusion_forward, params, sched))
    loss = fwd(x, mask, t, (k_vx, k_vm, k_noise))
    loss = jax.block_until_ready(loss)

    assert loss.shape == () and bool(jnp.isfinite(loss))
    print("KERNEL_OK")
</pallas_src>

<mosaic_0001>
module attributes {stable_mosaic.version = 11 : i64} {
  func.func @_fused_forward_kernel(%arg0: i32, %arg1: memref<2x768xf32, #tpu.memory_space<vmem>>, %arg2: memref<2x768xf32, #tpu.memory_space<vmem>>, %arg3: memref<768x128xbf16, #tpu.memory_space<vmem>>, %arg4: memref<1x128xf32, #tpu.memory_space<vmem>>, %arg5: memref<2x64xf32, #tpu.memory_space<vmem>>, %arg6: memref<2x64xf32, #tpu.memory_space<vmem>>, %arg7: memref<2x64xf32, #tpu.memory_space<vmem>>, %arg8: memref<2x192xf32, #tpu.memory_space<vmem>>, %arg9: memref<2x32xf32, #tpu.memory_space<vmem>>, %arg10: memref<192x32xbf16, #tpu.memory_space<vmem>>, %arg11: memref<1x32xf32, #tpu.memory_space<vmem>>, %arg12: memref<192x128xbf16, #tpu.memory_space<vmem>>, %arg13: memref<1x128xf32, #tpu.memory_space<vmem>>, %arg14: memref<128x128xbf16, #tpu.memory_space<vmem>>, %arg15: memref<1x128xf32, #tpu.memory_space<vmem>>, %arg16: memref<2x9xf32, #tpu.memory_space<vmem>>, %arg17: memref<8x128xf32, #tpu.memory_space<vmem>>) attributes {dimension_semantics = [#tpu.dimension_semantics<arbitrary>], iteration_bounds = array<i64: 1>, scalar_prefetch = 0 : i64, scratch_operands = 0 : i64, tpu.core_type = #tpu.core_type<tc>, window_params = [{pipeline_mode = #tpu.pipeline_mode<synchronous>, transform_indices = @transform_0, window_bounds = array<i64: 2, 768>}, {pipeline_mode = #tpu.pipeline_mode<synchronous>, transform_indices = @transform_1, window_bounds = array<i64: 2, 768>}, {pipeline_mode = #tpu.pipeline_mode<synchronous>, transform_indices = @transform_2, window_bounds = array<i64: 768, 128>}, {pipeline_mode = #tpu.pipeline_mode<synchronous>, transform_indices = @transform_3, window_bounds = array<i64: 1, 128>}, {pipeline_mode = #tpu.pipeline_mode<synchronous>, transform_indices = @transform_4, window_bounds = array<i64: 2, 64>}, {pipeline_mode = #tpu.pipeline_mode<synchronous>, transform_indices = @transform_5, window_bounds = array<i64: 2, 64>}, {pipeline_mode = #tpu.pipeline_mode<synchronous>, transform_indices = @transform_6, window_bounds = array<i64: 2, 64>}, {pipeline_mode = #tpu.pipeline_mode<synchronous>, transform_indices = @transform_7, window_bounds = array<i64: 2, 192>}, {pipeline_mode = #tpu.pipeline_mode<synchronous>, transform_indices = @transform_8, window_bounds = array<i64: 2, 32>}, {pipeline_mode = #tpu.pipeline_mode<synchronous>, transform_indices = @transform_9, window_bounds = array<i64: 192, 32>}, {pipeline_mode = #tpu.pipeline_mode<synchronous>, transform_indices = @transform_10, window_bounds = array<i64: 1, 32>}, {pipeline_mode = #tpu.pipeline_mode<synchronous>, transform_indices = @transform_11, window_bounds = array<i64: 192, 128>}, {pipeline_mode = #tpu.pipeline_mode<synchronous>, transform_indices = @transform_12, window_bounds = array<i64: 1, 128>}, {pipeline_mode = #tpu.pipeline_mode<synchronous>, transform_indices = @transform_13, window_bounds = array<i64: 128, 128>}, {pipeline_mode = #tpu.pipeline_mode<synchronous>, transform_indices = @transform_14, window_bounds = array<i64: 1, 128>}, {pipeline_mode = #tpu.pipeline_mode<synchronous>, transform_indices = @transform_15, window_bounds = array<i64: 2, 9>}, {pipeline_mode = #tpu.pipeline_mode<synchronous>, transform_indices = @transform_16, window_bounds = array<i64: 8, 128>}]} {
    %c0 = arith.constant 0 : index
    %c0_0 = arith.constant 0 : index
    %0 = vector.load %arg1[%c0, %c0_0] : memref<2x768xf32, #tpu.memory_space<vmem>>, vector<2x768xf32>
    %1 = arith.truncf %0 : vector<2x768xf32> to vector<2x768xbf16>
    %c0_1 = arith.constant 0 : index
    %c0_2 = arith.constant 0 : index
    %2 = vector.load %arg3[%c0_1, %c0_2] : memref<768x128xbf16, #tpu.memory_space<vmem>>, vector<768x128xbf16>
    %cst = arith.constant dense<0.000000e+00> : vector<2x128xf32>
    %3 = tpu.matmul %1, %2, %cst {dimension_numbers = #tpu.dot_dimension_numbers<[1], [0], [0], [1], [0, 0, 1, 1], [], []>} : vector<2x768xbf16>, vector<768x128xbf16>, vector<2x128xf32> -> vector<2x128xf32>
    %c0_3 = arith.constant 0 : index
    %c0_4 = arith.constant 0 : index
    %4 = vector.load %arg4[%c0_3, %c0_4] : memref<1x128xf32, #tpu.memory_space<vmem>>, vector<1x128xf32>
    %5 = vector.broadcast %4 : vector<1x128xf32> to vector<2x128xf32>
    %6 = arith.addf %3, %5 : vector<2x128xf32>
    %7 = vector.extract_strided_slice %6 {offsets = [0, 0], sizes = [2, 64], strides = [1, 1]} : vector<2x128xf32> to vector<2x64xf32>
    %8 = vector.extract_strided_slice %6 {offsets = [0, 64], sizes = [2, 64], strides = [1, 1]} : vector<2x128xf32> to vector<2x64xf32>
    %cst_5 = arith.constant -3.000000e+01 : f32
    %cst_6 = arith.constant 2.000000e+01 : f32
    %9 = vector.broadcast %cst_5 : f32 to vector<2x64xf32>
    %10 = arith.maximumf %9, %8 : vector<2x64xf32>
    %11 = vector.broadcast %cst_6 : f32 to vector<2x64xf32>
    %12 = arith.minimumf %11, %10 : vector<2x64xf32>
    %cst_7 = arith.constant 5.000000e-01 : f32
    %13 = vector.broadcast %cst_7 : f32 to vector<2x64xf32>
    %14 = arith.mulf %13, %12 : vector<2x64xf32>
    %15 = math.exp %14 : vector<2x64xf32>
    %c0_8 = arith.constant 0 : index
    %c0_9 = arith.constant 0 : index
    %16 = vector.load %arg5[%c0_8, %c0_9] : memref<2x64xf32, #tpu.memory_space<vmem>>, vector<2x64xf32>
    %17 = arith.mulf %15, %16 : vector<2x64xf32>
    %18 = arith.addf %7, %17 : vector<2x64xf32>
    %c0_10 = arith.constant 0 : index
    %c0_11 = arith.constant 0 : index
    %19 = vector.load %arg2[%c0_10, %c0_11] : memref<2x768xf32, #tpu.memory_space<vmem>>, vector<2x768xf32>
    %20 = arith.truncf %19 : vector<2x768xf32> to vector<2x768xbf16>
    %c0_12 = arith.constant 0 : index
    %c0_13 = arith.constant 0 : index
    %21 = vector.load %arg3[%c0_12, %c0_13] : memref<768x128xbf16, #tpu.memory_space<vmem>>, vector<768x128xbf16>
    %cst_14 = arith.constant dense<0.000000e+00> : vector<2x128xf32>
    %22 = tpu.matmul %20, %21, %cst_14 {dimension_numbers = #tpu.dot_dimension_numbers<[1], [0], [0], [1], [0, 0, 1, 1], [], []>} : vector<2x768xbf16>, vector<768x128xbf16>, vector<2x128xf32> -> vector<2x128xf32>
    %c0_15 = arith.constant 0 : index
    %c0_16 = arith.constant 0 : index
    %23 = vector.load %arg4[%c0_15, %c0_16] : memref<1x128xf32, #tpu.memory_space<vmem>>, vector<1x128xf32>
    %24 = vector.broadcast %23 : vector<1x128xf32> to vector<2x128xf32>
    %25 = arith.addf %22, %24 : vector<2x128xf32>
    %26 = vector.extract_strided_slice %25 {offsets = [0, 0], sizes = [2, 64], strides = [1, 1]} : vector<2x128xf32> to vector<2x64xf32>
    %27 = vector.extract_strided_slice %25 {offsets = [0, 64], sizes = [2, 64], strides = [1, 1]} : vector<2x128xf32> to vector<2x64xf32>
    %cst_17 = arith.constant -3.000000e+01 : f32
    %cst_18 = arith.constant 2.000000e+01 : f32
    %28 = vector.broadcast %cst_17 : f32 to vector<2x64xf32>
    %29 = arith.maximumf %28, %27 : vector<2x64xf32>
    %30 = vector.broadcast %cst_18 : f32 to vector<2x64xf32>
    %31 = arith.minimumf %30, %29 : vector<2x64xf32>
    %cst_19 = arith.constant 5.000000e-01 : f32
    %32 = vector.broadcast %cst_19 : f32 to vector<2x64xf32>
    %33 = arith.mulf %32, %31 : vector<2x64xf32>
    %34 = math.exp %33 : vector<2x64xf32>
    %c0_20 = arith.constant 0 : index
    %c0_21 = arith.constant 0 : index
    %35 = vector.load %arg6[%c0_20, %c0_21] : memref<2x64xf32, #tpu.memory_space<vmem>>, vector<2x64xf32>
    %36 = arith.mulf %34, %35 : vector<2x64xf32>
    %37 = arith.addf %26, %36 : vector<2x64xf32>
    %c0_22 = arith.constant 0 : index
    %c0_23 = arith.constant 0 : index
    %38 = vector.load %arg7[%c0_22, %c0_23] : memref<2x64xf32, #tpu.memory_space<vmem>>, vector<2x64xf32>
    %c0_24 = arith.constant 0 : index
    %c0_25 = arith.constant 0 : index
    %39 = vector.load %arg16[%c0_24, %c0_25] : memref<2x9xf32, #tpu.memory_space<vmem>>, vector<2x1xf32>
    %c0_26 = arith.constant 0 : index
    %c1 = arith.constant 1 : index
    %40 = vector.load %arg16[%c0_26, %c1] : memref<2x9xf32, #tpu.memory_space<vmem>>, vector<2x1xf32>
    %41 = vector.broadcast %39 : vector<2x1xf32> to vector<2x64xf32>
    %42 = arith.mulf %41, %18 : vector<2x64xf32>
    %43 = vector.broadcast %40 : vector<2x1xf32> to vector<2x64xf32>
    %44 = arith.mulf %43, %38 : vector<2x64xf32>
    %45 = arith.addf %42, %44 : vector<2x64xf32>
    %c0_27 = arith.constant 0 : index
    %c0_28 = arith.constant 0 : index
    %46 = vector.load %arg8[%c0_27, %c0_28] : memref<2x192xf32, #tpu.memory_space<vmem>>, vector<2x192xf32>
    %47 = arith.truncf %46 : vector<2x192xf32> to vector<2x192xbf16>
    %c0_29 = arith.constant 0 : index
    %c0_30 = arith.constant 0 : index
    %48 = vector.load %arg10[%c0_29, %c0_30] : memref<192x32xbf16, #tpu.memory_space<vmem>>, vector<192x32xbf16>
    %cst_31 = arith.constant dense<0.000000e+00> : vector<2x32xf32>
    %49 = tpu.matmul %47, %48, %cst_31 {dimension_numbers = #tpu.dot_dimension_numbers<[1], [0], [0], [1], [0, 0, 1, 1], [], []>} : vector<2x192xbf16>, vector<192x32xbf16>, vector<2x32xf32> -> vector<2x32xf32>
    %c0_32 = arith.constant 0 : index
    %c0_33 = arith.constant 0 : index
    %50 = vector.load %arg11[%c0_32, %c0_33] : memref<1x32xf32, #tpu.memory_space<vmem>>, vector<1x32xf32>
    %51 = vector.broadcast %50 : vector<1x32xf32> to vector<2x32xf32>
    %52 = arith.addf %49, %51 : vector<2x32xf32>
    %53 = arith.truncf %45 : vector<2x64xf32> to vector<2x64xbf16>
    %c0_34 = arith.constant 0 : index
    %c0_35 = arith.constant 0 : index
    %54 = vector.load %arg12[%c0_34, %c0_35] : memref<192x128xbf16, #tpu.memory_space<vmem>>, vector<64x128xbf16>
    %cst_36 = arith.constant dense<0.000000e+00> : vector<2x128xf32>
    %55 = tpu.matmul %53, %54, %cst_36 {dimension_numbers = #tpu.dot_dimension_numbers<[1], [0], [0], [1], [0, 0, 1, 1], [], []>} : vector<2x64xbf16>, vector<64x128xbf16>, vector<2x128xf32> -> vector<2x128xf32>
    %56 = arith.truncf %37 : vector<2x64xf32> to vector<2x64xbf16>
    %c64 = arith.constant 64 : index
    %c0_37 = arith.constant 0 : index
    %57 = vector.load %arg12[%c64, %c0_37] : memref<192x128xbf16, #tpu.memory_space<vmem>>, vector<64x128xbf16>
    %cst_38 = arith.constant dense<0.000000e+00> : vector<2x128xf32>
    %58 = tpu.matmul %56, %57, %cst_38 {dimension_numbers = #tpu.dot_dimension_numbers<[1], [0], [0], [1], [0, 0, 1, 1], [], []>} : vector<2x64xbf16>, vector<64x128xbf16>, vector<2x128xf32> -> vector<2x128xf32>
    %59 = arith.addf %55, %58 : vector<2x128xf32>
    %60 = arith.truncf %52 : vector<2x32xf32> to vector<2x32xbf16>
    %c128 = arith.constant 128 : index
    %c0_39 = arith.constant 0 : index
    %61 = vector.load %arg12[%c128, %c0_39] : memref<192x128xbf16, #tpu.memory_space<vmem>>, vector<32x128xbf16>
    %cst_40 = arith.constant dense<0.000000e+00> : vector<2x128xf32>
    %62 = tpu.matmul %60, %61, %cst_40 {dimension_numbers = #tpu.dot_dimension_numbers<[1], [0], [0], [1], [0, 0, 1, 1], [], []>} : vector<2x32xbf16>, vector<32x128xbf16>, vector<2x128xf32> -> vector<2x128xf32>
    %63 = arith.addf %59, %62 : vector<2x128xf32>
    %c0_41 = arith.constant 0 : index
    %c0_42 = arith.constant 0 : index
    %64 = vector.load %arg9[%c0_41, %c0_42] : memref<2x32xf32, #tpu.memory_space<vmem>>, vector<2x32xf32>
    %65 = arith.truncf %64 : vector<2x32xf32> to vector<2x32xbf16>
    %c160 = arith.constant 160 : index
    %c0_43 = arith.constant 0 : index
    %66 = vector.load %arg12[%c160, %c0_43] : memref<192x128xbf16, #tpu.memory_space<vmem>>, vector<32x128xbf16>
    %cst_44 = arith.constant dense<0.000000e+00> : vector<2x128xf32>
    %67 = tpu.matmul %65, %66, %cst_44 {dimension_numbers = #tpu.dot_dimension_numbers<[1], [0], [0], [1], [0, 0, 1, 1], [], []>} : vector<2x32xbf16>, vector<32x128xbf16>, vector<2x128xf32> -> vector<2x128xf32>
    %68 = arith.addf %63, %67 : vector<2x128xf32>
    %c0_45 = arith.constant 0 : index
    %c0_46 = arith.constant 0 : index
    %69 = vector.load %arg13[%c0_45, %c0_46] : memref<1x128xf32, #tpu.memory_space<vmem>>, vector<1x128xf32>
    %70 = vector.broadcast %69 : vector<1x128xf32> to vector<2x128xf32>
    %71 = arith.addf %68, %70 : vector<2x128xf32>
    %72 = arith.negf %71 : vector<2x128xf32>
    %73 = math.exp %72 : vector<2x128xf32>
    %cst_47 = arith.constant 1.000000e+00 : f32
    %74 = vector.broadcast %cst_47 : f32 to vector<2x128xf32>
    %75 = arith.addf %74, %73 : vector<2x128xf32>
    %76 = arith.divf %74, %75 : vector<2x128xf32>
    %77 = arith.mulf %71, %76 : vector<2x128xf32>
    %78 = arith.truncf %77 : vector<2x128xf32> to vector<2x128xbf16>
    %c0_48 = arith.constant 0 : index
    %c0_49 = arith.constant 0 : index
    %79 = vector.load %arg14[%c0_48, %c0_49] : memref<128x128xbf16, #tpu.memory_space<vmem>>, vector<128x128xbf16>
    %cst_50 = arith.constant dense<0.000000e+00> : vector<2x128xf32>
    %80 = tpu.matmul %78, %79, %cst_50 {dimension_numbers = #tpu.dot_dimension_numbers<[1], [0], [0], [1], [0, 0, 1, 1], [], []>} : vector<2x128xbf16>, vector<128x128xbf16>, vector<2x128xf32> -> vector<2x128xf32>
    %c0_51 = arith.constant 0 : index
    %c0_52 = arith.constant 0 : index
    %81 = vector.load %arg15[%c0_51, %c0_52] : memref<1x128xf32, #tpu.memory_space<vmem>>, vector<1x128xf32>
    %82 = vector.broadcast %81 : vector<1x128xf32> to vector<2x128xf32>
    %83 = arith.addf %80, %82 : vector<2x128xf32>
    %84 = vector.extract_strided_slice %83 {offsets = [0, 0], sizes = [2, 64], strides = [1, 1]} : vector<2x128xf32> to vector<2x64xf32>
    %85 = vector.extract_strided_slice %83 {offsets = [0, 64], sizes = [2, 64], strides = [1, 1]} : vector<2x128xf32> to vector<2x64xf32>
    %c0_53 = arith.constant 0 : index
    %c2 = arith.constant 2 : index
    %86 = vector.load %arg16[%c0_53, %c2] : memref<2x9xf32, #tpu.memory_space<vmem>>, vector<2x1xf32>
    %c0_54 = arith.constant 0 : index
    %c3 = arith.constant 3 : index
    %87 = vector.load %arg16[%c0_54, %c3] : memref<2x9xf32, #tpu.memory_space<vmem>>, vector<2x1xf32>
    %c0_55 = arith.constant 0 : index
    %c4 = arith.constant 4 : index
    %88 = vector.load %arg16[%c0_55, %c4] : memref<2x9xf32, #tpu.memory_space<vmem>>, vector<2x1xf32>
    %c0_56 = arith.constant 0 : index
    %c5 = arith.constant 5 : index
    %89 = vector.load %arg16[%c0_56, %c5] : memref<2x9xf32, #tpu.memory_space<vmem>>, vector<2x1xf32>
    %c0_57 = arith.constant 0 : index
    %c6 = arith.constant 6 : index
    %90 = vector.load %arg16[%c0_57, %c6] : memref<2x9xf32, #tpu.memory_space<vmem>>, vector<2x1xf32>
    %c0_58 = arith.constant 0 : index
    %c7 = arith.constant 7 : index
    %91 = vector.load %arg16[%c0_58, %c7] : memref<2x9xf32, #tpu.memory_space<vmem>>, vector<2x1xf32>
    %c0_59 = arith.constant 0 : index
    %c8 = arith.constant 8 : index
    %92 = vector.load %arg16[%c0_59, %c8] : memref<2x9xf32, #tpu.memory_space<vmem>>, vector<2x1xf32>
    %93 = vector.broadcast %88 : vector<2x1xf32> to vector<2x64xf32>
    %94 = arith.mulf %93, %18 : vector<2x64xf32>
    %95 = vector.broadcast %89 : vector<2x1xf32> to vector<2x64xf32>
    %96 = arith.mulf %95, %45 : vector<2x64xf32>
    %97 = arith.addf %94, %96 : vector<2x64xf32>
    %98 = vector.broadcast %86 : vector<2x1xf32> to vector<2x64xf32>
    %99 = arith.mulf %98, %45 : vector<2x64xf32>
    %100 = vector.broadcast %87 : vector<2x1xf32> to vector<2x64xf32>
    %101 = arith.mulf %100, %84 : vector<2x64xf32>
    %102 = arith.subf %99, %101 : vector<2x64xf32>
    %103 = vector.broadcast %88 : vector<2x1xf32> to vector<2x64xf32>
    %104 = arith.mulf %103, %102 : vector<2x64xf32>
    %105 = vector.broadcast %89 : vector<2x1xf32> to vector<2x64xf32>
    %106 = arith.mulf %105, %45 : vector<2x64xf32>
    %107 = arith.addf %104, %106 : vector<2x64xf32>
    %cst_60 = arith.constant 1.000000e+00 : f32
    %108 = vector.broadcast %cst_60 : f32 to vector<2x64xf32>
    %109 = arith.addf %85, %108 : vector<2x64xf32>
    %cst_61 = arith.constant 5.000000e-01 : f32
    %110 = vector.broadcast %cst_61 : f32 to vector<2x64xf32>
    %111 = arith.mulf %109, %110 : vector<2x64xf32>
    %112 = vector.broadcast %91 : vector<2x1xf32> to vector<2x64xf32>
    %113 = arith.mulf %111, %112 : vector<2x64xf32>
    %cst_62 = arith.constant 1.000000e+00 : f32
    %114 = vector.broadcast %cst_62 : f32 to vector<2x64xf32>
    %115 = arith.subf %114, %111 : vector<2x64xf32>
    %116 = vector.broadcast %90 : vector<2x1xf32> to vector<2x64xf32>
    %117 = arith.mulf %115, %116 : vector<2x64xf32>
    %118 = arith.addf %113, %117 : vector<2x64xf32>
    %cst_63 = arith.constant -5.000000e-01 : f32
    %119 = vector.broadcast %cst_63 : f32 to vector<2x64xf32>
    %120 = arith.mulf %119, %118 : vector<2x64xf32>
    %121 = math.exp %120 : vector<2x64xf32>
    %122 = arith.mulf %121, %121 : vector<2x64xf32>
    %123 = math.exp %90 : vector<2x1xf32>
    %cst_64 = arith.constant -1.000000e+00 : f32
    %124 = vector.broadcast %cst_64 : f32 to vector<2x64xf32>
    %125 = arith.addf %124, %118 : vector<2x64xf32>
    %126 = vector.broadcast %90 : vector<2x1xf32> to vector<2x64xf32>
    %127 = arith.subf %125, %126 : vector<2x64xf32>
    %128 = vector.broadcast %123 : vector<2x1xf32> to vector<2x64xf32>
    %129 = arith.mulf %128, %122 : vector<2x64xf32>
    %130 = arith.addf %127, %129 : vector<2x64xf32>
    %131 = arith.subf %97, %107 : vector<2x64xf32>
    %132 = arith.mulf %131, %131 : vector<2x64xf32>
    %133 = arith.mulf %132, %122 : vector<2x64xf32>
    %134 = arith.addf %130, %133 : vector<2x64xf32>
    %cst_65 = arith.constant 5.000000e-01 : f32
    %135 = vector.broadcast %cst_65 : f32 to vector<2x64xf32>
    %136 = arith.mulf %135, %134 : vector<2x64xf32>
    %cst_66 = arith.constant dense<0.000000e+00> : vector<2xf32>
    %137 = vector.multi_reduction <add>, %136, %cst_66 [1] : vector<2x64xf32> to vector<2xf32>
    %138 = vector.shape_cast %137 : vector<2xf32> to vector<2x1xf32>
    %cst_67 = arith.constant 6.400000e+01 : f32
    %139 = vector.broadcast %cst_67 : f32 to vector<2x1xf32>
    %140 = arith.divf %138, %139 : vector<2x1xf32>
    %cst_68 = arith.constant 1.44269502 : f32
    %141 = vector.broadcast %cst_68 : f32 to vector<2x1xf32>
    %142 = arith.mulf %140, %141 : vector<2x1xf32>
    %143 = arith.subf %18, %107 : vector<2x64xf32>
    %cst_69 = arith.constant 0.00392156886 : f32
    %144 = vector.broadcast %cst_69 : f32 to vector<2x64xf32>
    %145 = arith.addf %143, %144 : vector<2x64xf32>
    %146 = arith.mulf %121, %145 : vector<2x64xf32>
    %cst_70 = arith.constant 0.00392156886 : f32
    %147 = vector.broadcast %cst_70 : f32 to vector<2x64xf32>
    %148 = arith.subf %143, %147 : vector<2x64xf32>
    %149 = arith.mulf %121, %148 : vector<2x64xf32>
    %150 = arith.mulf %146, %146 : vector<2x64xf32>
    %151 = arith.mulf %146, %150 : vector<2x64xf32>
    %cst_71 = arith.constant 4.471500e-02 : f32
    %152 = vector.broadcast %cst_71 : f32 to vector<2x64xf32>
    %153 = arith.mulf %152, %151 : vector<2x64xf32>
    %154 = arith.addf %146, %153 : vector<2x64xf32>
    %cst_72 = arith.constant 0.797884583 : f32
    %155 = vector.broadcast %cst_72 : f32 to vector<2x64xf32>
    %156 = arith.mulf %155, %154 : vector<2x64xf32>
    %157 = math.tanh %156 : vector<2x64xf32>
    %cst_73 = arith.constant 1.000000e+00 : f32
    %158 = vector.broadcast %cst_73 : f32 to vector<2x64xf32>
    %159 = arith.addf %158, %157 : vector<2x64xf32>
    %cst_74 = arith.constant 5.000000e-01 : f32
    %160 = vector.broadcast %cst_74 : f32 to vector<2x64xf32>
    %161 = arith.mulf %160, %159 : vector<2x64xf32>
    %162 = arith.mulf %149, %149 : vector<2x64xf32>
    %163 = arith.mulf %149, %162 : vector<2x64xf32>
    %cst_75 = arith.constant 4.471500e-02 : f32
    %164 = vector.broadcast %cst_75 : f32 to vector<2x64xf32>
    %165 = arith.mulf %164, %163 : vector<2x64xf32>
    %166 = arith.addf %149, %165 : vector<2x64xf32>
    %cst_76 = arith.constant 0.797884583 : f32
    %167 = vector.broadcast %cst_76 : f32 to vector<2x64xf32>
    %168 = arith.mulf %167, %166 : vector<2x64xf32>
    %169 = math.tanh %168 : vector<2x64xf32>
    %cst_77 = arith.constant 1.000000e+00 : f32
    %170 = vector.broadcast %cst_77 : f32 to vector<2x64xf32>
    %171 = arith.addf %170, %169 : vector<2x64xf32>
    %cst_78 = arith.constant 5.000000e-01 : f32
    %172 = vector.broadcast %cst_78 : f32 to vector<2x64xf32>
    %173 = arith.mulf %172, %171 : vector<2x64xf32>
    %cst_79 = arith.constant 9.99999996E-13 : f32
    %174 = vector.broadcast %cst_79 : f32 to vector<2x64xf32>
    %175 = arith.maximumf %161, %174 : vector<2x64xf32>
    %176 = math.log %175 : vector<2x64xf32>
    %cst_80 = arith.constant 1.000000e+00 : f32
    %177 = vector.broadcast %cst_80 : f32 to vector<2x64xf32>
    %178 = arith.subf %177, %173 : vector<2x64xf32>
    %cst_81 = arith.constant 9.99999996E-13 : f32
    %179 = vector.broadcast %cst_81 : f32 to vector<2x64xf32>
    %180 = arith.maximumf %178, %179 : vector<2x64xf32>
    %181 = math.log %180 : vector<2x64xf32>
    %182 = arith.subf %161, %173 : vector<2x64xf32>
    %cst_82 = arith.constant -9.990000e-01 : f32
    %183 = vector.broadcast %cst_82 : f32 to vector<2x64xf32>
    %184 = arith.cmpf olt, %18, %183 : vector<2x64xf32>
    %cst_83 = arith.constant 9.990000e-01 : f32
    %185 = vector.broadcast %cst_83 : f32 to vector<2x64xf32>
    %186 = arith.cmpf ogt, %18, %185 : vector<2x64xf32>
    %cst_84 = arith.constant 9.99999996E-13 : f32
    %187 = vector.broadcast %cst_84 : f32 to vector<2x64xf32>
    %188 = arith.maximumf %182, %187 : vector<2x64xf32>
    %189 = math.log %188 : vector<2x64xf32>
    %190 = arith.select %186, %181, %189 : vector<2x64xi1>, vector<2x64xf32>
    %191 = arith.select %184, %176, %190 : vector<2x64xi1>, vector<2x64xf32>
    %cst_85 = arith.constant dense<0.000000e+00> : vector<2xf32>
    %192 = vector.multi_reduction <add>, %191, %cst_85 [1] : vector<2x64xf32> to vector<2xf32>
    %193 = vector.shape_cast %192 : vector<2xf32> to vector<2x1xf32>
    %cst_86 = arith.constant 6.400000e+01 : f32
    %194 = vector.broadcast %cst_86 : f32 to vector<2x1xf32>
    %195 = arith.divf %193, %194 : vector<2x1xf32>
    %cst_87 = arith.constant 0.000000e+00 : f32
    %196 = vector.broadcast %cst_87 : f32 to vector<2x1xf32>
    %197 = arith.subf %196, %195 : vector<2x1xf32>
    %cst_88 = arith.constant 1.44269502 : f32
    %198 = vector.broadcast %cst_88 : f32 to vector<2x1xf32>
    %199 = arith.mulf %197, %198 : vector<2x1xf32>
    %cst_89 = arith.constant 5.000000e-01 : f32
    %200 = vector.broadcast %cst_89 : f32 to vector<2x1xf32>
    %201 = arith.cmpf ogt, %92, %200 : vector<2x1xf32>
    %202 = arith.select %201, %199, %142 : vector<2x1xi1>, vector<2x1xf32>
    %cst_90 = arith.constant 1.000000e+03 : f32
    %203 = vector.broadcast %cst_90 : f32 to vector<2x1xf32>
    %204 = arith.mulf %202, %203 : vector<2x1xf32>
    %205 = vector.shape_cast %204 : vector<2x1xf32> to vector<1x2x1xf32>
    %cst_91 = arith.constant dense<0.000000e+00> : vector<1xf32>
    %206 = vector.multi_reduction <add>, %205, %cst_91 [1, 2] : vector<1x2x1xf32> to vector<1xf32>
    %207 = vector.shape_cast %206 : vector<1xf32> to vector<1x1x1xf32>
    %208 = vector.extract %207[0, 0, 0] : f32 from vector<1x1x1xf32>
    %cst_92 = arith.constant 5.000000e-01 : f32
    %209 = arith.mulf %208, %cst_92 : f32
    %cst_93 = arith.constant 0.000000e+00 : f32
    %210 = vector.broadcast %cst_93 : f32 to vector<8x128xf32>
    %211 = vector.broadcast %209 : f32 to vector<8x128xf32>
    %212 = arith.addf %211, %210 : vector<8x128xf32>
    %c0_94 = arith.constant 0 : index
    %c0_95 = arith.constant 0 : index
    %213 = vector.load %arg17[%c0_94, %c0_95] : memref<8x128xf32, #tpu.memory_space<vmem>>, vector<8x128xf32>
    tpu.vector_store %arg17[%c0_94, %c0_95], %212 {strides = array<i32>} : memref<8x128xf32, #tpu.memory_space<vmem>>, vector<8x128xf32>,
    return
  }
  func.func @transform_0(%arg0: i32) -> (i32, i32) {
    %c0_i32 = arith.constant 0 : i32
    %c0_i32_0 = arith.constant 0 : i32
    %c0_i32_1 = arith.constant 0 : i32
    return %c0_i32, %c0_i32_0 : i32, i32
  }
  func.func @transform_1(%arg0: i32) -> (i32, i32) {
    %c0_i32 = arith.constant 0 : i32
    %c0_i32_0 = arith.constant 0 : i32
    %c0_i32_1 = arith.constant 0 : i32
    return %c0_i32, %c0_i32_0 : i32, i32
  }
  func.func @transform_2(%arg0: i32) -> (i32, i32) {
    %c0_i32 = arith.constant 0 : i32
    %c0_i32_0 = arith.constant 0 : i32
    %c0_i32_1 = arith.constant 0 : i32
    return %c0_i32, %c0_i32_0 : i32, i32
  }
  func.func @transform_3(%arg0: i32) -> (i32, i32) {
    %c0_i32 = arith.constant 0 : i32
    %c0_i32_0 = arith.constant 0 : i32
    %c0_i32_1 = arith.constant 0 : i32
    return %c0_i32, %c0_i32_0 : i32, i32
  }
  func.func @transform_4(%arg0: i32) -> (i32, i32) {
    %c0_i32 = arith.constant 0 : i32
    %c0_i32_0 = arith.constant 0 : i32
    %c0_i32_1 = arith.constant 0 : i32
    return %c0_i32, %c0_i32_0 : i32, i32
  }
  func.func @transform_5(%arg0: i32) -> (i32, i32) {
    %c0_i32 = arith.constant 0 : i32
    %c0_i32_0 = arith.constant 0 : i32
    %c0_i32_1 = arith.constant 0 : i32
    return %c0_i32, %c0_i32_0 : i32, i32
  }
  func.func @transform_6(%arg0: i32) -> (i32, i32) {
    %c0_i32 = arith.constant 0 : i32
    %c0_i32_0 = arith.constant 0 : i32
    %c0_i32_1 = arith.constant 0 : i32
    return %c0_i32, %c0_i32_0 : i32, i32
  }
  func.func @transform_7(%arg0: i32) -> (i32, i32) {
    %c0_i32 = arith.constant 0 : i32
    %c0_i32_0 = arith.constant 0 : i32
    %c0_i32_1 = arith.constant 0 : i32
    return %c0_i32, %c0_i32_0 : i32, i32
  }
  func.func @transform_8(%arg0: i32) -> (i32, i32) {
    %c0_i32 = arith.constant 0 : i32
    %c0_i32_0 = arith.constant 0 : i32
    %c0_i32_1 = arith.constant 0 : i32
    return %c0_i32, %c0_i32_0 : i32, i32
  }
  func.func @transform_9(%arg0: i32) -> (i32, i32) {
    %c0_i32 = arith.constant 0 : i32
    %c0_i32_0 = arith.constant 0 : i32
    %c0_i32_1 = arith.constant 0 : i32
    return %c0_i32, %c0_i32_0 : i32, i32
  }
  func.func @transform_10(%arg0: i32) -> (i32, i32) {
    %c0_i32 = arith.constant 0 : i32
    %c0_i32_0 = arith.constant 0 : i32
    %c0_i32_1 = arith.constant 0 : i32
    return %c0_i32, %c0_i32_0 : i32, i32
  }
  func.func @transform_11(%arg0: i32) -> (i32, i32) {
    %c0_i32 = arith.constant 0 : i32
    %c0_i32_0 = arith.constant 0 : i32
    %c0_i32_1 = arith.constant 0 : i32
    return %c0_i32, %c0_i32_0 : i32, i32
  }
  func.func @transform_12(%arg0: i32) -> (i32, i32) {
    %c0_i32 = arith.constant 0 : i32
    %c0_i32_0 = arith.constant 0 : i32
    %c0_i32_1 = arith.constant 0 : i32
    return %c0_i32, %c0_i32_0 : i32, i32
  }
  func.func @transform_13(%arg0: i32) -> (i32, i32) {
    %c0_i32 = arith.constant 0 : i32
    %c0_i32_0 = arith.constant 0 : i32
    %c0_i32_1 = arith.constant 0 : i32
    return %c0_i32, %c0_i32_0 : i32, i32
  }
  func.func @transform_14(%arg0: i32) -> (i32, i32) {
    %c0_i32 = arith.constant 0 : i32
    %c0_i32_0 = arith.constant 0 : i32
    %c0_i32_1 = arith.constant 0 : i32
    return %c0_i32, %c0_i32_0 : i32, i32
  }
  func.func @transform_15(%arg0: i32) -> (i32, i32) {
    %c0_i32 = arith.constant 0 : i32
    %c0_i32_0 = arith.constant 0 : i32
    %c0_i32_1 = arith.constant 0 : i32
    return %c0_i32, %c0_i32_0 : i32, i32
  }
  func.func @transform_16(%arg0: i32) -> (i32, i32) {
    %c0_i32 = arith.constant 0 : i32
    %c0_i32_0 = arith.constant 0 : i32
    %c0_i32_1 = arith.constant 0 : i32
    return %c0_i32, %c0_i32_0 : i32, i32
  }
}

</mosaic_0001>

<llo_original>
// kernel: diffusion_forward.1
$region0: #{diffusion_forward.1}
  #allocation0 [shape = 'u32[]', space=smem, size = 0x4, offset = 0x4, fixed_abs, tag = 'smem constant byte address 0x4 - core index']
  #allocation1 [shape = 'u32[144,128]{1,0:T(1,128)}', space=vmem, size = 0x12000, scoped, tag = 'internal scratch']
  %s0 = inlined_call_operand.vmem [shape: f32[2,768], index: 0, kind: input, shape index: {}]
  %s1 = inlined_call_operand.vmem [shape: f32[2,768], index: 1, kind: input, shape index: {}]
  %s2 = inlined_call_operand.vmem [shape: bf16[768,128], index: 2, kind: input, shape index: {}]
  %s3 = inlined_call_operand.vmem [shape: f32[1,128], index: 3, kind: input, shape index: {}, may-alias: {3,12,14}]
  %s4 = inlined_call_operand.vmem [shape: f32[2,64], index: 4, kind: input, shape index: {}]
  %s5 = inlined_call_operand.vmem [shape: f32[2,64], index: 5, kind: input, shape index: {}]
  %s6 = inlined_call_operand.vmem [shape: f32[2,64], index: 6, kind: input, shape index: {}]
  %s7 = inlined_call_operand.vmem [shape: f32[2,192], index: 7, kind: input, shape index: {}]
  %s8 = inlined_call_operand.vmem [shape: f32[2,32], index: 8, kind: input, shape index: {}]
  %s9 = inlined_call_operand.vmem [shape: bf16[192,32], index: 9, kind: input, shape index: {}]
  %s10 = inlined_call_operand.vmem [shape: f32[1,32], index: 10, kind: input, shape index: {}]
  %s11 = inlined_call_operand.vmem [shape: bf16[192,128], index: 11, kind: input, shape index: {}]
  %s12 = inlined_call_operand.vmem [shape: f32[1,128], index: 12, kind: input, shape index: {}, may-alias: {3,12,14}]
  %s13 = inlined_call_operand.vmem [shape: bf16[128,128], index: 13, kind: input, shape index: {}]
  %s14 = inlined_call_operand.vmem [shape: f32[1,128], index: 14, kind: input, shape index: {}, may-alias: {3,12,14}]
  %s15 = inlined_call_operand.vmem [shape: f32[2,9], index: 15, kind: input, shape index: {}]
  %s16 = inlined_call_operand.vmem [shape: f32[8,128], index: 16, kind: output, shape index: {}]
  %s17 = sld [smem:[#allocation0]]
  $region74: #{diffusion_forward.1} parent=0
    _
  %s19 = ssub.s32 1, %s17
  %s20 = scalar_select 0, %s19, %s17
  // Predicated region
  $region2: #{diffusion_forward.1} parent=0 // pred_check
    _
  $region3: #{diffusion_forward.1} parent=0 // pred_check_branch
    %22 = sbr.rel (0) target = $region5
  $region4: #{diffusion_forward.1} parent=0 // pred_region
    _
  $region5: #{diffusion_forward.1} parent=0 // pred_fallthru
    _
  // Predicated region
  $region6: #{diffusion_forward.1} parent=0 // pred_check
    _
  $region7: #{diffusion_forward.1} parent=0 // pred_check_branch
    %24 = sbr.rel (0) target = $region9
  $region8: #{diffusion_forward.1} parent=0 // pred_region
    _
  $region9: #{diffusion_forward.1} parent=0 // pred_fallthru
    _
  // Predicated region
  $region10: #{diffusion_forward.1} parent=0 // pred_check
    _
  $region11: #{diffusion_forward.1} parent=0 // pred_check_branch
    %26 = sbr.rel (0) target = $region13
  $region12: #{diffusion_forward.1} parent=0 // pred_region
    _
  $region13: #{diffusion_forward.1} parent=0 // pred_fallthru
    _
  // Predicated region
  $region14: #{diffusion_forward.1} parent=0 // pred_check
    _
  $region15: #{diffusion_forward.1} parent=0 // pred_check_branch
    %28 = sbr.rel (0) target = $region17
  $region16: #{diffusion_forward.1} parent=0 // pred_region
    _
  $region17: #{diffusion_forward.1} parent=0 // pred_fallthru
    _
  // Predicated region
  $region18: #{diffusion_forward.1} parent=0 // pred_check
    _
  $region19: #{diffusion_forward.1} parent=0 // pred_check_branch
    %30 = sbr.rel (0) target = $region21
  $region20: #{diffusion_forward.1} parent=0 // pred_region
    _
  $region21: #{diffusion_forward.1} parent=0 // pred_fallthru
    _
  // Predicated region
  $region22: #{diffusion_forward.1} parent=0 // pred_check
    _
  $region23: #{diffusion_forward.1} parent=0 // pred_check_branch
    %32 = sbr.rel (0) target = $region25
  $region24: #{diffusion_forward.1} parent=0 // pred_region
    _
  $region25: #{diffusion_forward.1} parent=0 // pred_fallthru
    _
  // Predicated region
  $region26: #{diffusion_forward.1} parent=0 // pred_check
    _
  $region27: #{diffusion_forward.1} parent=0 // pred_check_branch
    %34 = sbr.rel (0) target = $region29
  $region28: #{diffusion_forward.1} parent=0 // pred_region
    _
  $region29: #{diffusion_forward.1} parent=0 // pred_fallthru
    _
  // Predicated region
  $region30: #{diffusion_forward.1} parent=0 // pred_check
    _
  $region31: #{diffusion_forward.1} parent=0 // pred_check_branch
    %36 = sbr.rel (0) target = $region33
  $region32: #{diffusion_forward.1} parent=0 // pred_region
    _
  $region33: #{diffusion_forward.1} parent=0 // pred_fallthru
    _
  // Predicated region
  $region34: #{diffusion_forward.1} parent=0 // pred_check
    _
  $region35: #{diffusion_forward.1} parent=0 // pred_check_branch
    %38 = sbr.rel (0) target = $region37
  $region36: #{diffusion_forward.1} parent=0 // pred_region
    _
  $region37: #{diffusion_forward.1} parent=0 // pred_fallthru
    _
  // Predicated region
  $region38: #{diffusion_forward.1} parent=0 // pred_check
    _
  $region39: #{diffusion_forward.1} parent=0 // pred_check_branch
    %40 = sbr.rel (0) target = $region41
  $region40: #{diffusion_forward.1} parent=0 // pred_region
    _
  $region41: #{diffusion_forward.1} parent=0 // pred_fallthru
    _
  // Predicated region
  $region42: #{diffusion_forward.1} parent=0 // pred_check
    _
  $region43: #{diffusion_forward.1} parent=0 // pred_check_branch
    %42 = sbr.rel (0) target = $region45
  $region44: #{diffusion_forward.1} parent=0 // pred_region
    _
  $region45: #{diffusion_forward.1} parent=0 // pred_fallthru
    _
  // Predicated region
  $region46: #{diffusion_forward.1} parent=0 // pred_check
    _
  $region47: #{diffusion_forward.1} parent=0 // pred_check_branch
    %44 = sbr.rel (0) target = $region49
  $region48: #{diffusion_forward.1} parent=0 // pred_region
    _
  $region49: #{diffusion_forward.1} parent=0 // pred_fallthru
    _
  // Predicated region
  $region50: #{diffusion_forward.1} parent=0 // pred_check
    _
  $region51: #{diffusion_forward.1} parent=0 // pred_check_branch
    %46 = sbr.rel (0) target = $region53
  $region52: #{diffusion_forward.1} parent=0 // pred_region
    _
  $region53: #{diffusion_forward.1} parent=0 // pred_fallthru
    _
  // Predicated region
  $region54: #{diffusion_forward.1} parent=0 // pred_check
    _
  $region55: #{diffusion_forward.1} parent=0 // pred_check_branch
    %48 = sbr.rel (0) target = $region57
  $region56: #{diffusion_forward.1} parent=0 // pred_region
    _
  $region57: #{diffusion_forward.1} parent=0 // pred_fallthru
    _
  // Predicated region
  $region58: #{diffusion_forward.1} parent=0 // pred_check
    _
  $region59: #{diffusion_forward.1} parent=0 // pred_check_branch
    %50 = sbr.rel (0) target = $region61
  $region60: #{diffusion_forward.1} parent=0 // pred_region
    _
  $region61: #{diffusion_forward.1} parent=0 // pred_fallthru
    _
  // Predicated region
  $region62: #{diffusion_forward.1} parent=0 // pred_check
    _
  $region63: #{diffusion_forward.1} parent=0 // pred_check_branch
    %52 = sbr.rel (0) target = $region65
  $region64: #{diffusion_forward.1} parent=0 // pred_region
    _
  $region65: #{diffusion_forward.1} parent=0 // pred_fallthru
    _
  %v54 = vld [vmem:[%s0] sm:$0xff]
  %v55 = vld [vmem:[%s0 + $0x8] sm:$0xf]
  %v58 = vcombine.high %v54, %v54
  %v60 = vunpack.c.l.s4 1983009808
  %v61 = vunpack.c.0.s8 %v60
  %v62 = vlaneseq
  %v63 = vshrl.u32 %v62, 7
  %v64 = vsub.s32 %v61, %v63
  %v65 = vrot.slane %v54, %v64
  %v67 = vunpack.c.l.s4 1983009808
  %v68 = vunpack.c.0.s8 %v67
  %v69 = vlaneseq
  %v70 = vshrl.u32 %v69, 7
  %v71 = vsub.s32 %v68, %v70
  %v72 = vrot.slane %v58, %v71
  %v73 = vcombine.high %v65, %v65
  %v74 = vcombine.high %v72, %v72
  %v76 = vunpack.c.l.s4 1983009808
  %v77 = vunpack.c.0.s8 %v76
  %v78 = vlaneseq
  %v79 = vshrl.u32 %v78, 7
  %v80 = vsub.s32 %v77, %v79
  %v81 = vrot.slane %v55, %v80
  %v82 = vcombine.high %v81, %v81
  %v89 = vpack.c.bf16 %v65, %v65
  %v90 = vpack.c.bf16 %v73, %v73
  %v91 = vpack.c.bf16 %v72, %v72
  %v92 = vpack.c.bf16 %v74, %v74
  %v93 = vpack.c.bf16 %v81, %v81
  %v94 = vpack.c.bf16 %v82, %v82
  %v95 = vld [vmem:[%s2] sm:$0xf]
  %v96 = vld [vmem:[%s2 + $0x4] sm:$0xf]
  %v97 = vld [vmem:[%s2 + $0x8] sm:$0xf]
  %v98 = vld [vmem:[%s2 + $0xc] sm:$0xf]
  %v99 = vld [vmem:[%s2 + $0x10] sm:$0xf]
  %v100 = vld [vmem:[%s2 + $0x14] sm:$0xf]
  %v101 = vld [vmem:[%s2 + $0x18] sm:$0xf]
  %v102 = vld [vmem:[%s2 + $0x1c] sm:$0xf]
  %v103 = vld [vmem:[%s2 + $0x20] sm:$0xf]
  %v104 = vld [vmem:[%s2 + $0x24] sm:$0xf]
  %v105 = vld [vmem:[%s2 + $0x28] sm:$0xf]
  %v106 = vld [vmem:[%s2 + $0x2c] sm:$0xf]
  %v107 = vld [vmem:[%s2 + $0x30] sm:$0xf]
  %v108 = vld [vmem:[%s2 + $0x34] sm:$0xf]
  %v109 = vld [vmem:[%s2 + $0x38] sm:$0xf]
  %v110 = vld [vmem:[%s2 + $0x3c] sm:$0xf]
  %v111 = vld [vmem:[%s2 + $0x40] sm:$0xf]
  %v112 = vld [vmem:[%s2 + $0x44] sm:$0xf]
  %v113 = vld [vmem:[%s2 + $0x48] sm:$0xf]
  %v114 = vld [vmem:[%s2 + $0x4c] sm:$0xf]
  %v115 = vld [vmem:[%s2 + $0x50] sm:$0xf]
  %v116 = vld [vmem:[%s2 + $0x54] sm:$0xf]
  %v117 = vld [vmem:[%s2 + $0x58] sm:$0xf]
  %v118 = vld [vmem:[%s2 + $0x5c] sm:$0xf]
  %v119 = vld [vmem:[%s2 + $0x60] sm:$0xf]
  %v120 = vld [vmem:[%s2 + $0x64] sm:$0xf]
  %v121 = vld [vmem:[%s2 + $0x68] sm:$0xf]
  %v122 = vld [vmem:[%s2 + $0x6c] sm:$0xf]
  %v123 = vld [vmem:[%s2 + $0x70] sm:$0xf]
  %v124 = vld [vmem:[%s2 + $0x74] sm:$0xf]
  %v125 = vld [vmem:[%s2 + $0x78] sm:$0xf]
  %v126 = vld [vmem:[%s2 + $0x7c] sm:$0xf]
  %v127 = vld [vmem:[%s2 + $0x80] sm:$0xf]
  %v128 = vld [vmem:[%s2 + $0x84] sm:$0xf]
  %v129 = vld [vmem:[%s2 + $0x88] sm:$0xf]
  %v130 = vld [vmem:[%s2 + $0x8c] sm:$0xf]
  %v131 = vld [vmem:[%s2 + $0x90] sm:$0xf]
  %v132 = vld [vmem:[%s2 + $0x94] sm:$0xf]
  %v133 = vld [vmem:[%s2 + $0x98] sm:$0xf]
  %v134 = vld [vmem:[%s2 + $0x9c] sm:$0xf]
  %v135 = vld [vmem:[%s2 + $0xa0] sm:$0xf]
  %v136 = vld [vmem:[%s2 + $0xa4] sm:$0xf]
  %v137 = vld [vmem:[%s2 + $0xa8] sm:$0xf]
  %v138 = vld [vmem:[%s2 + $0xac] sm:$0xf]
  %v139 = vld [vmem:[%s2 + $0xb0] sm:$0xf]
  %v140 = vld [vmem:[%s2 + $0xb4] sm:$0xf]
  %v141 = vld [vmem:[%s2 + $0xb8] sm:$0xf]
  %v142 = vld [vmem:[%s2 + $0xbc] sm:$0xf]
  %v143 = vld [vmem:[%s2 + $0xc0] sm:$0xf]
  %v144 = vld [vmem:[%s2 + $0xc4] sm:$0xf]
  %v145 = vld [vmem:[%s2 + $0xc8] sm:$0xf]
  %v146 = vld [vmem:[%s2 + $0xcc] sm:$0xf]
  %v147 = vld [vmem:[%s2 + $0xd0] sm:$0xf]
  %v148 = vld [vmem:[%s2 + $0xd4] sm:$0xf]
  %v149 = vld [vmem:[%s2 + $0xd8] sm:$0xf]
  %v150 = vld [vmem:[%s2 + $0xdc] sm:$0xf]
  %v151 = vld [vmem:[%s2 + $0xe0] sm:$0xf]
  %v152 = vld [vmem:[%s2 + $0xe4] sm:$0xf]
  %v153 = vld [vmem:[%s2 + $0xe8] sm:$0xf]
  %v154 = vld [vmem:[%s2 + $0xec] sm:$0xf]
  %v155 = vld [vmem:[%s2 + $0xf0] sm:$0xf]
  %v156 = vld [vmem:[%s2 + $0xf4] sm:$0xf]
  %v157 = vld [vmem:[%s2 + $0xf8] sm:$0xf]
  %v158 = vld [vmem:[%s2 + $0xfc] sm:$0xf]
  %v159 = vld [vmem:[%s2 + $0x100] sm:$0xf]
  %v160 = vld [vmem:[%s2 + $0x104] sm:$0xf]
  %v161 = vld [vmem:[%s2 + $0x108] sm:$0xf]
  %v162 = vld [vmem:[%s2 + $0x10c] sm:$0xf]
  %v163 = vld [vmem:[%s2 + $0x110] sm:$0xf]
  %v164 = vld [vmem:[%s2 + $0x114] sm:$0xf]
  %v165 = vld [vmem:[%s2 + $0x118] sm:$0xf]
  %v166 = vld [vmem:[%s2 + $0x11c] sm:$0xf]
  %v167 = vld [vmem:[%s2 + $0x120] sm:$0xf]
  %v168 = vld [vmem:[%s2 + $0x124] sm:$0xf]
  %v169 = vld [vmem:[%s2 + $0x128] sm:$0xf]
  %v170 = vld [vmem:[%s2 + $0x12c] sm:$0xf]
  %v171 = vld [vmem:[%s2 + $0x130] sm:$0xf]
  %v172 = vld [vmem:[%s2 + $0x134] sm:$0xf]
  %v173 = vld [vmem:[%s2 + $0x138] sm:$0xf]
  %v174 = vld [vmem:[%s2 + $0x13c] sm:$0xf]
  %v175 = vld [vmem:[%s2 + $0x140] sm:$0xf]
  %v176 = vld [vmem:[%s2 + $0x144] sm:$0xf]
  %v177 = vld [vmem:[%s2 + $0x148] sm:$0xf]
  %v178 = vld [vmem:[%s2 + $0x14c] sm:$0xf]
  %v179 = vld [vmem:[%s2 + $0x150] sm:$0xf]
  %v180 = vld [vmem:[%s2 + $0x154] sm:$0xf]
  %v181 = vld [vmem:[%s2 + $0x158] sm:$0xf]
  %v182 = vld [vmem:[%s2 + $0x15c] sm:$0xf]
  %v183 = vld [vmem:[%s2 + $0x160] sm:$0xf]
  %v184 = vld [vmem:[%s2 + $0x164] sm:$0xf]
  %v185 = vld [vmem:[%s2 + $0x168] sm:$0xf]
  %v186 = vld [vmem:[%s2 + $0x16c] sm:$0xf]
  %v187 = vld [vmem:[%s2 + $0x170] sm:$0xf]
  %v188 = vld [vmem:[%s2 + $0x174] sm:$0xf]
  %v189 = vld [vmem:[%s2 + $0x178] sm:$0xf]
  %v190 = vld [vmem:[%s2 + $0x17c] sm:$0xf]
  %v191 = vld [vmem:[%s3] sm:$0x1]
  %v193 = vlaneseq
  %v194 = vshrl.u32 %v193, 7
  %v195 = vsub.s32 0, %v194
  %v196 = vrot.slane %v191, %v195
  %v294 = vunpack.c.l.b16 %v95
  %v295 = vunpack.c.l.b16 %v96
  %v296 = vunpack.c.l.b16 %v97
  %v297 = vunpack.c.l.b16 %v98
  %v298 = vunpack.c.l.b16 %v99
  %v299 = vunpack.c.l.b16 %v100
  %v300 = vunpack.c.l.b16 %v101
  %v301 = vunpack.c.l.b16 %v102
  %v302 = vunpack.c.l.b16 %v103
  %v303 = vunpack.c.l.b16 %v104
  %v304 = vunpack.c.l.b16 %v105
  %v305 = vunpack.c.l.b16 %v106
  %v306 = vunpack.c.l.b16 %v107
  %v307 = vunpack.c.l.b16 %v108
  %v308 = vunpack.c.l.b16 %v109
  %v309 = vunpack.c.l.b16 %v110
  %v310 = vunpack.c.l.b16 %v111
  %v311 = vunpack.c.l.b16 %v112
  %v312 = vunpack.c.l.b16 %v113
  %v313 = vunpack.c.l.b16 %v114
  %v314 = vunpack.c.l.b16 %v115
  %v315 = vunpack.c.l.b16 %v116
  %v316 = vunpack.c.l.b16 %v117
  %v317 = vunpack.c.l.b16 %v118
  %v318 = vunpack.c.l.b16 %v119
  %v319 = vunpack.c.l.b16 %v120
  %v320 = vunpack.c.l.b16 %v121
  %v321 = vunpack.c.l.b16 %v122
  %v322 = vunpack.c.l.b16 %v123
  %v323 = vunpack.c.l.b16 %v124
  %v324 = vunpack.c.l.b16 %v125
  %v325 = vunpack.c.l.b16 %v126
  %v326 = vunpack.c.l.b16 %v127
  %v327 = vunpack.c.l.b16 %v128
  %v328 = vunpack.c.l.b16 %v129
  %v329 = vunpack.c.l.b16 %v130
  %v330 = vunpack.c.l.b16 %v131
  %v331 = vunpack.c.l.b16 %v132
  %v332 = vunpack.c.l.b16 %v133
  %v333 = vunpack.c.l.b16 %v134
  %v334 = vunpack.c.l.b16 %v135
  %v335 = vunpack.c.l.b16 %v136
  %v336 = vunpack.c.l.b16 %v137
  %v337 = vunpack.c.l.b16 %v138
  %v338 = vunpack.c.l.b16 %v139
  %v339 = vunpack.c.l.b16 %v140
  %v340 = vunpack.c.l.b16 %v141
  %v341 = vunpack.c.l.b16 %v142
  %v342 = vunpack.c.l.b16 %v143
  %v343 = vunpack.c.l.b16 %v144
  %v344 = vunpack.c.l.b16 %v145
  %v345 = vunpack.c.l.b16 %v146
  %v346 = vunpack.c.l.b16 %v147
  %v347 = vunpack.c.l.b16 %v148
  %v348 = vunpack.c.l.b16 %v149
  %v349 = vunpack.c.l.b16 %v150
  %v350 = vunpack.c.l.b16 %v151
  %v351 = vunpack.c.l.b16 %v152
  %v352 = vunpack.c.l.b16 %v153
  %v353 = vunpack.c.l.b16 %v154
  %v354 = vunpack.c.l.b16 %v155
  %v355 = vunpack.c.l.b16 %v156
  %v356 = vunpack.c.l.b16 %v157
  %v357 = vunpack.c.l.b16 %v158
  %v358 = vunpack.c.l.b16 %v159
  %v359 = vunpack.c.l.b16 %v160
  %v360 = vunpack.c.l.b16 %v161
  %v361 = vunpack.c.l.b16 %v162
  %v362 = vunpack.c.l.b16 %v163
  %v363 = vunpack.c.l.b16 %v164
  %v364 = vunpack.c.l.b16 %v165
  %v365 = vunpack.c.l.b16 %v166
  %v366 = vunpack.c.l.b16 %v167
  %v367 = vunpack.c.l.b16 %v168
  %v368 = vunpack.c.l.b16 %v169
  %v369 = vunpack.c.l.b16 %v170
  %v370 = vunpack.c.l.b16 %v171
  %v371 = vunpack.c.l.b16 %v172
  %v372 = vunpack.c.l.b16 %v173
  %v373 = vunpack.c.l.b16 %v174
  %v374 = vunpack.c.l.b16 %v175
  %v375 = vunpack.c.l.b16 %v176
  %v376 = vunpack.c.l.b16 %v177
  %v377 = vunpack.c.l.b16 %v178
  %v378 = vunpack.c.l.b16 %v179
  %v379 = vunpack.c.l.b16 %v180
  %v380 = vunpack.c.l.b16 %v181
  %v381 = vunpack.c.l.b16 %v182
  %v382 = vunpack.c.l.b16 %v183
  %v383 = vunpack.c.l.b16 %v184
  %v384 = vunpack.c.l.b16 %v185
  %v385 = vunpack.c.l.b16 %v186
  %v386 = vunpack.c.l.b16 %v187
  %v387 = vunpack.c.l.b16 %v188
  %v388 = vunpack.c.l.b16 %v189
  %v389 = vunpack.c.l.b16 %v190
  %v390 = vpack.c.b16 %v295, %v294
  %v391 = vpack.c.b16 %v297, %v296
  %v392 = vpack.c.b16 %v299, %v298
  %v393 = vpack.c.b16 %v301, %v300
  %v394 = vpack.c.b16 %v303, %v302
  %v395 = vpack.c.b16 %v305, %v304
  %v396 = vpack.c.b16 %v307, %v306
  %v397 = vpack.c.b16 %v309, %v308
  %v398 = vpack.c.b16 %v311, %v310
  %v399 = vpack.c.b16 %v313, %v312
  %v400 = vpack.c.b16 %v315, %v314
  %v401 = vpack.c.b16 %v317, %v316
  %v402 = vpack.c.b16 %v319, %v318
  %v403 = vpack.c.b16 %v321, %v320
  %v404 = vpack.c.b16 %v323, %v322
  %v405 = vpack.c.b16 %v325, %v324
  %v406 = vpack.c.b16 %v327, %v326
  %v407 = vpack.c.b16 %v329, %v328
  %v408 = vpack.c.b16 %v331, %v330
  %v409 = vpack.c.b16 %v333, %v332
  %v410 = vpack.c.b16 %v335, %v334
  %v411 = vpack.c.b16 %v337, %v336
  %v412 = vpack.c.b16 %v339, %v338
  %v413 = vpack.c.b16 %v341, %v340
  %v414 = vpack.c.b16 %v343, %v342
  %v415 = vpack.c.b16 %v345, %v344
  %v416 = vpack.c.b16 %v347, %v346
  %v417 = vpack.c.b16 %v349, %v348
  %v418 = vpack.c.b16 %v351, %v350
  %v419 = vpack.c.b16 %v353, %v352
  %v420 = vpack.c.b16 %v355, %v354
  %v421 = vpack.c.b16 %v357, %v356
  %v422 = vpack.c.b16 %v359, %v358
  %v423 = vpack.c.b16 %v361, %v360
  %v424 = vpack.c.b16 %v363, %v362
  %v425 = vpack.c.b16 %v365, %v364
  %v426 = vpack.c.b16 %v367, %v366
  %v427 = vpack.c.b16 %v369, %v368
  %v428 = vpack.c.b16 %v371, %v370
  %v429 = vpack.c.b16 %v373, %v372
  %v430 = vpack.c.b16 %v375, %v374
  %v431 = vpack.c.b16 %v377, %v376
  %v432 = vpack.c.b16 %v379, %v378
  %v433 = vpack.c.b16 %v381, %v380
  %v434 = vpack.c.b16 %v383, %v382
  %v435 = vpack.c.b16 %v385, %v384
  %v436 = vpack.c.b16 %v387, %v386
  %v437 = vpack.c.b16 %v389, %v388
  %486 = vmatprep.subr.bf16.mxu0 0
  %487 = vmatpush1.bf16.msra.mxu0 %v390
  %488 = vmatprep.subr.bf16.mxu0 0
  %489 = vmatpush1.bf16.msra.mxu0 %v391
  %490 = vmatprep.subr.bf16.mxu0 0
  %491 = vmatpush1.bf16.msra.mxu0 %v392
  %492 = vmatprep.subr.bf16.mxu0 0
  %493 = vmatpush1.bf16.msra.mxu0 %v393
  %494 = vmatprep.subr.bf16.mxu0 0
  %495 = vmatpush1.bf16.msra.mxu0 %v394
  %496 = vmatprep.subr.bf16.mxu0 0
  %497 = vmatpush1.bf16.msra.mxu0 %v395
  %498 = vmatprep.subr.bf16.mxu0 0
  %499 = vmatpush1.bf16.msra.mxu0 %v396
  %500 = vmatprep.subr.bf16.mxu0 0
  %501 = vmatpush1.bf16.msra.mxu0 %v397
  %502 = vmatprep.subr.bf16.mxu0 0
  %503 = vmatpush1.bf16.msra.mxu0 %v398
  %504 = vmatprep.subr.bf16.mxu0 0
  %505 = vmatpush1.bf16.msra.mxu0 %v399
  %506 = vmatprep.subr.bf16.mxu0 0
  %507 = vmatpush1.bf16.msra.mxu0 %v400
  %508 = vmatprep.subr.bf16.mxu0 0
  %509 = vmatpush1.bf16.msra.mxu0 %v401
  %510 = vmatprep.subr.bf16.mxu0 0
  %511 = vmatpush1.bf16.msra.mxu0 %v402
  %512 = vmatprep.subr.bf16.mxu0 0
  %513 = vmatpush1.bf16.msra.mxu0 %v403
  %514 = vmatprep.subr.bf16.mxu0 0
  %515 = vmatpush1.bf16.msra.mxu0 %v404
  %516 = vmatprep.subr.bf16.mxu0 0
  %517 = vmatpush1.bf16.msra.mxu0 %v405
  %518 = vmatprep.mubr.bf16.mxu0 %v90
  %519 = vmatmul.mubr.bf16.gmra.mrb[0].mxu0 %v89
  %v520 = vpop.f32.mrb[0].mxu0
  %v521 = vadd.f32 %v196, %v520
  %v522 = vpop.f32.mrb[0].mxu0
  %v523 = vpop.f32.mrb[0].mxu0
  %v524 = vpop.f32.mrb[0].mxu0
  %525 = vdwg.mxu0
  %526 = vmatprep.subr.bf16.mxu0 0
  %527 = vmatpush1.bf16.msra.mxu0 %v406
  %528 = vmatprep.subr.bf16.mxu0 0
  %529 = vmatpush1.bf16.msra.mxu0 %v407
  %530 = vmatprep.subr.bf16.mxu0 0
  %531 = vmatpush1.bf16.msra.mxu0 %v408
  %532 = vmatprep.subr.bf16.mxu0 0
  %533 = vmatpush1.bf16.msra.mxu0 %v409
  %534 = vmatprep.subr.bf16.mxu0 0
  %535 = vmatpush1.bf16.msra.mxu0 %v410
  %536 = vmatprep.subr.bf16.mxu0 0
  %537 = vmatpush1.bf16.msra.mxu0 %v411
  %538 = vmatprep.subr.bf16.mxu0 0
  %539 = vmatpush1.bf16.msra.mxu0 %v412
  %540 = vmatprep.subr.bf16.mxu0 0
  %541 = vmatpush1.bf16.msra.mxu0 %v413
  %542 = vmatprep.subr.bf16.mxu0 0
  %543 = vmatpush1.bf16.msra.mxu0 %v414
  %544 = vmatprep.subr.bf16.mxu0 0
  %545 = vmatpush1.bf16.msra.mxu0 %v415
  %546 = vmatprep.subr.bf16.mxu0 0
  %547 = vmatpush1.bf16.msra.mxu0 %v416
  %548 = vmatprep.subr.bf16.mxu0 0
  %549 = vmatpush1.bf16.msra.mxu0 %v417
  %550 = vmatprep.subr.bf16.mxu0 0
  %551 = vmatpush1.bf16.msra.mxu0 %v418
  %552 = vmatprep.subr.bf16.mxu0 0
  %553 = vmatpush1.bf16.msra.mxu0 %v419
  %554 = vmatprep.subr.bf16.mxu0 0
  %555 = vmatpush1.bf16.msra.mxu0 %v420
  %556 = vmatprep.subr.bf16.mxu0 0
  %557 = vmatpush1.bf16.msra.mxu0 %v421
  %558 = vmatprep.mubr.bf16.mxu0 %v92
  %559 = vmatmul.mubr.bf16.gmra.mrb[0].mxu0 %v91
  %v560 = vpop.f32.mrb[0].mxu0
  %v561 = vadd.f32 %v521, %v560
  %v562 = vpop.f32.mrb[0].mxu0
  %v563 = vpop.f32.mrb[0].mxu0
  %v564 = vpop.f32.mrb[0].mxu0
  %565 = vdwg.mxu0
  %566 = vmatprep.subr.bf16.mxu0 0
  %567 = vmatpush1.bf16.msra.mxu0 %v422
  %568 = vmatprep.subr.bf16.mxu0 0
  %569 = vmatpush1.bf16.msra.mxu0 %v423
  %570 = vmatprep.subr.bf16.mxu0 0
  %571 = vmatpush1.bf16.msra.mxu0 %v424
  %572 = vmatprep.subr.bf16.mxu0 0
  %573 = vmatpush1.bf16.msra.mxu0 %v425
  %574 = vmatprep.subr.bf16.mxu0 0
  %575 = vmatpush1.bf16.msra.mxu0 %v426
  %576 = vmatprep.subr.bf16.mxu0 0
  %577 = vmatpush1.bf16.msra.mxu0 %v427
  %578 = vmatprep.subr.bf16.mxu0 0
  %579 = vmatpush1.bf16.msra.mxu0 %v428
  %580 = vmatprep.subr.bf16.mxu0 0
  %581 = vmatpush1.bf16.msra.mxu0 %v429
  %582 = vmatprep.subr.bf16.mxu0 0
  %583 = vmatpush1.bf16.msra.mxu0 %v430
  %584 = vmatprep.subr.bf16.mxu0 0
  %585 = vmatpush1.bf16.msra.mxu0 %v431
  %586 = vmatprep.subr.bf16.mxu0 0
  %587 = vmatpush1.bf16.msra.mxu0 %v432
  %588 = vmatprep.subr.bf16.mxu0 0
  %589 = vmatpush1.bf16.msra.mxu0 %v433
  %590 = vmatprep.subr.bf16.mxu0 0
  %591 = vmatpush1.bf16.msra.mxu0 %v434
  %592 = vmatprep.subr.bf16.mxu0 0
  %593 = vmatpush1.bf16.msra.mxu0 %v435
  %594 = vmatprep.subr.bf16.mxu0 0
  %595 = vmatpush1.bf16.msra.mxu0 %v436
  %596 = vmatprep.subr.bf16.mxu0 0
  %597 = vmatpush1.bf16.msra.mxu0 %v437
  %598 = vmatprep.mubr.bf16.mxu0 %v94
  %599 = vmatmul.mubr.bf16.gmra.mrb[0].mxu0 %v93
  %v600 = vpop.f32.mrb[0].mxu0
  %v601 = vadd.f32 %v561, %v600
  %v602 = vpop.f32.mrb[0].mxu0
  %v603 = vpop.f32.mrb[0].mxu0
  %v604 = vpop.f32.mrb[0].mxu0
  %605 = vdwg.mxu0
  %v606 = vmax.f32 %v601, -30.0
  %v607 = vmin.f32 %v606, 20.0
  %v608 = vmul.f32 %v607, 0.5
  %v609 = vmul.f32 %v608, 1.442695
  %v610 = vpow.pop %v609
  %v611 = vld [vmem:[%s4] sm:$0x3]
  %613 = vrot.lane.b32.xlu0 %v611, 64
  %v614 = vpop.permute.xlu0 %613
  %v616 = vmul.f32 %v610, %v614
  %618 = vrot.lane.b32.xlu0 %v616, 64
  %v619 = vpop.permute.xlu0 %618
  %v621 = vadd.f32 %v601, %v619
  %v622 = vld [vmem:[%s1] sm:$0xff]
  %v623 = vld [vmem:[%s1 + $0x8] sm:$0xf]
  %v626 = vcombine.high %v622, %v622
  %v628 = vunpack.c.l.s4 1983009808
  %v629 = vunpack.c.0.s8 %v628
  %v630 = vlaneseq
  %v631 = vshrl.u32 %v630, 7
  %v632 = vsub.s32 %v629, %v631
  %v633 = vrot.slane %v622, %v632
  %v635 = vunpack.c.l.s4 1983009808
  %v636 = vunpack.c.0.s8 %v635
  %v637 = vlaneseq
  %v638 = vshrl.u32 %v637, 7
  %v639 = vsub.s32 %v636, %v638
  %v640 = vrot.slane %v626, %v639
  %v641 = vcombine.high %v633, %v633
  %v642 = vcombine.high %v640, %v640
  %v644 = vunpack.c.l.s4 1983009808
  %v645 = vunpack.c.0.s8 %v644
  %v646 = vlaneseq
  %v647 = vshrl.u32 %v646, 7
  %v648 = vsub.s32 %v645, %v647
  %v649 = vrot.slane %v623, %v648
  %v650 = vcombine.high %v649, %v649
  %v657 = vpack.c.bf16 %v633, %v633
  %v658 = vpack.c.bf16 %v641, %v641
  %v659 = vpack.c.bf16 %v640, %v640
  %v660 = vpack.c.bf16 %v642, %v642
  %v661 = vpack.c.bf16 %v649, %v649
  %v662 = vpack.c.bf16 %v650, %v650
  %663 = vmatprep.subr.bf16.mxu0 0
  %664 = vmatpush1.bf16.msra.mxu0 %v390
  %665 = vmatprep.subr.bf16.mxu0 0
  %666 = vmatpush1.bf16.msra.mxu0 %v391
  %667 = vmatprep.subr.bf16.mxu0 0
  %668 = vmatpush1.bf16.msra.mxu0 %v392
  %669 = vmatprep.subr.bf16.mxu0 0
  %670 = vmatpush1.bf16.msra.mxu0 %v393
  %671 = vmatprep.subr.bf16.mxu0 0
  %672 = vmatpush1.bf16.msra.mxu0 %v394
  %673 = vmatprep.subr.bf16.mxu0 0
  %674 = vmatpush1.bf16.msra.mxu0 %v395
  %675 = vmatprep.subr.bf16.mxu0 0
  %676 = vmatpush1.bf16.msra.mxu0 %v396
  %677 = vmatprep.subr.bf16.mxu0 0
  %678 = vmatpush1.bf16.msra.mxu0 %v397
  %679 = vmatprep.subr.bf16.mxu0 0
  %680 = vmatpush1.bf16.msra.mxu0 %v398
  %681 = vmatprep.subr.bf16.mxu0 0
  %682 = vmatpush1.bf16.msra.mxu0 %v399
  %683 = vmatprep.subr.bf16.mxu0 0
  %684 = vmatpush1.bf16.msra.mxu0 %v400
  %685 = vmatprep.subr.bf16.mxu0 0
  %686 = vmatpush1.bf16.msra.mxu0 %v401
  %687 = vmatprep.subr.bf16.mxu0 0
  %688 = vmatpush1.bf16.msra.mxu0 %v402
  %689 = vmatprep.subr.bf16.mxu0 0
  %690 = vmatpush1.bf16.msra.mxu0 %v403
  %691 = vmatprep.subr.bf16.mxu0 0
  %692 = vmatpush1.bf16.msra.mxu0 %v404
  %693 = vmatprep.subr.bf16.mxu0 0
  %694 = vmatpush1.bf16.msra.mxu0 %v405
  %695 = vmatprep.mubr.bf16.mxu0 %v658
  %696 = vmatmul.mubr.bf16.gmra.mrb[0].mxu0 %v657
  %v697 = vpop.f32.mrb[0].mxu0
  %v698 = vadd.f32 %v196, %v697
  %v699 = vpop.f32.mrb[0].mxu0
  %v700 = vpop.f32.mrb[0].mxu0
  %v701 = vpop.f32.mrb[0].mxu0
  %702 = vdwg.mxu0
  %703 = vmatprep.subr.bf16.mxu0 0
  %704 = vmatpush1.bf16.msra.mxu0 %v406
  %705 = vmatprep.subr.bf16.mxu0 0
  %706 = vmatpush1.bf16.msra.mxu0 %v407
  %707 = vmatprep.subr.bf16.mxu0 0
  %708 = vmatpush1.bf16.msra.mxu0 %v408
  %709 = vmatprep.subr.bf16.mxu0 0
  %710 = vmatpush1.bf16.msra.mxu0 %v409
  %711 = vmatprep.subr.bf16.mxu0 0
  %712 = vmatpush1.bf16.msra.mxu0 %v410
  %713 = vmatprep.subr.bf16.mxu0 0
  %714 = vmatpush1.bf16.msra.mxu0 %v411
  %715 = vmatprep.subr.bf16.mxu0 0
  %716 = vmatpush1.bf16.msra.mxu0 %v412
  %717 = vmatprep.subr.bf16.mxu0 0
  %718 = vmatpush1.bf16.msra.mxu0 %v413
  %719 = vmatprep.subr.bf16.mxu0 0
  %720 = vmatpush1.bf16.msra.mxu0 %v414
  %721 = vmatprep.subr.bf16.mxu0 0
  %722 = vmatpush1.bf16.msra.mxu0 %v415
  %723 = vmatprep.subr.bf16.mxu0 0
  %724 = vmatpush1.bf16.msra.mxu0 %v416
  %725 = vmatprep.subr.bf16.mxu0 0
  %726 = vmatpush1.bf16.msra.mxu0 %v417
  %727 = vmatprep.subr.bf16.mxu0 0
  %728 = vmatpush1.bf16.msra.mxu0 %v418
  %729 = vmatprep.subr.bf16.mxu0 0
  %730 = vmatpush1.bf16.msra.mxu0 %v419
  %731 = vmatprep.subr.bf16.mxu0 0
  %732 = vmatpush1.bf16.msra.mxu0 %v420
  %733 = vmatprep.subr.bf16.mxu0 0
  %734 = vmatpush1.bf16.msra.mxu0 %v421
  %735 = vmatprep.mubr.bf16.mxu0 %v660
  %736 = vmatmul.mubr.bf16.gmra.mrb[0].mxu0 %v659
  %v737 = vpop.f32.mrb[0].mxu0
  %v738 = vadd.f32 %v698, %v737
  %v739 = vpop.f32.mrb[0].mxu0
  %v740 = vpop.f32.mrb[0].mxu0
  %v741 = vpop.f32.mrb[0].mxu0
  %742 = vdwg.mxu0
  %743 = vmatprep.subr.bf16.mxu0 0
  %744 = vmatpush1.bf16.msra.mxu0 %v422
  %745 = vmatprep.subr.bf16.mxu0 0
  %746 = vmatpush1.bf16.msra.mxu0 %v423
  %747 = vmatprep.subr.bf16.mxu0 0
  %748 = vmatpush1.bf16.msra.mxu0 %v424
  %749 = vmatprep.subr.bf16.mxu0 0
  %750 = vmatpush1.bf16.msra.mxu0 %v425
  %751 = vmatprep.subr.bf16.mxu0 0
  %752 = vmatpush1.bf16.msra.mxu0 %v426
  %753 = vmatprep.subr.bf16.mxu0 0
  %754 = vmatpush1.bf16.msra.mxu0 %v427
  %755 = vmatprep.subr.bf16.mxu0 0
  %756 = vmatpush1.bf16.msra.mxu0 %v428
  %757 = vmatprep.subr.bf16.mxu0 0
  %758 = vmatpush1.bf16.msra.mxu0 %v429
  %759 = vmatprep.subr.bf16.mxu0 0
  %760 = vmatpush1.bf16.msra.mxu0 %v430
  %761 = vmatprep.subr.bf16.mxu0 0
  %762 = vmatpush1.bf16.msra.mxu0 %v431
  %763 = vmatprep.subr.bf16.mxu0 0
  %764 = vmatpush1.bf16.msra.mxu0 %v432
  %765 = vmatprep.subr.bf16.mxu0 0
  %766 = vmatpush1.bf16.msra.mxu0 %v433
  %767 = vmatprep.subr.bf16.mxu0 0
  %768 = vmatpush1.bf16.msra.mxu0 %v434
  %769 = vmatprep.subr.bf16.mxu0 0
  %770 = vmatpush1.bf16.msra.mxu0 %v435
  %771 = vmatprep.subr.bf16.mxu0 0
  %772 = vmatpush1.bf16.msra.mxu0 %v436
  %773 = vmatprep.subr.bf16.mxu0 0
  %774 = vmatpush1.bf16.msra.mxu0 %v437
  %775 = vmatprep.mubr.bf16.mxu0 %v662
  %776 = vmatmul.mubr.bf16.gmra.mrb[0].mxu0 %v661
  %v777 = vpop.f32.mrb[0].mxu0
  %v778 = vadd.f32 %v738, %v777
  %v779 = vpop.f32.mrb[0].mxu0
  %v780 = vpop.f32.mrb[0].mxu0
  %v781 = vpop.f32.mrb[0].mxu0
  %782 = vdwg.mxu0
  %v783 = vmax.f32 %v778, -30.0
  %v784 = vmin.f32 %v783, 20.0
  %v785 = vmul.f32 %v784, 0.5
  %v786 = vmul.f32 %v785, 1.442695
  %v787 = vpow.pop %v786
  %v788 = vld [vmem:[%s5] sm:$0x3]
  %790 = vrot.lane.b32.xlu0 %v788, 64
  %v791 = vpop.permute.xlu0 %790
  %v793 = vmul.f32 %v787, %v791
  %795 = vrot.lane.b32.xlu0 %v793, 64
  %v796 = vpop.permute.xlu0 %795
  %v798 = vadd.f32 %v778, %v796
  %v799 = vld [vmem:[%s6] sm:$0x3]
  %v800 = vld [vmem:[%s15] sm:$0x3]
  %802 = vset.pattern.permute.xlu0 0
  %803 = vperm.xlu0 %802, %v800
  %v804 = vpop.permute.xlu0 %803
  %v806 = vmul.f32 %v804, %v621
  %807 = vset.pattern.permute.xlu0 1
  %808 = vperm.xlu0 %807, %v800
  %v809 = vpop.permute.xlu0 %808
  %v811 = vmul.f32 %v809, %v799
  %v812 = vadd.f32 %v806, %v811
  %v813 = vld [vmem:[%s7] sm:$0xf]
  %v816 = vunpack.c.l.s4 1983009808
  %v817 = vunpack.c.0.s8 %v816
  %v818 = vlaneseq
  %v819 = vshrl.u32 %v818, 7
  %v820 = vsub.s32 %v817, %v819
  %v821 = vrot.slane %v813, %v820
  %v822 = vcombine.high %v821, %v821
  %v825 = vpack.c.bf16 %v821, %v821
  %v826 = vpack.c.bf16 %v822, %v822
  %v827 = vld [vmem:[%s9] sm:$0xf]
  %v828 = vld [vmem:[%s9 + $0x4] sm:$0xf]
  %v829 = vld [vmem:[%s9 + $0x8] sm:$0xf]
  %v830 = vld [vmem:[%s9 + $0xc] sm:$0xf]
  %v831 = vld [vmem:[%s9 + $0x10] sm:$0xf]
  %v832 = vld [vmem:[%s9 + $0x14] sm:$0xf]
  %v833 = vld [vmem:[%s9 + $0x18] sm:$0xf]
  %v834 = vld [vmem:[%s9 + $0x1c] sm:$0xf]
  %v835 = vld [vmem:[%s9 + $0x20] sm:$0xf]
  %v836 = vld [vmem:[%s9 + $0x24] sm:$0xf]
  %v837 = vld [vmem:[%s9 + $0x28] sm:$0xf]
  %v838 = vld [vmem:[%s9 + $0x2c] sm:$0xf]
  %v839 = vld [vmem:[%s9 + $0x30] sm:$0xf]
  %v840 = vld [vmem:[%s9 + $0x34] sm:$0xf]
  %v841 = vld [vmem:[%s9 + $0x38] sm:$0xf]
  %v842 = vld [vmem:[%s9 + $0x3c] sm:$0xf]
  %v843 = vld [vmem:[%s9 + $0x40] sm:$0xf]
  %v844 = vld [vmem:[%s9 + $0x44] sm:$0xf]
  %v845 = vld [vmem:[%s9 + $0x48] sm:$0xf]
  %v846 = vld [vmem:[%s9 + $0x4c] sm:$0xf]
  %v847 = vld [vmem:[%s9 + $0x50] sm:$0xf]
  %v848 = vld [vmem:[%s9 + $0x54] sm:$0xf]
  %v849 = vld [vmem:[%s9 + $0x58] sm:$0xf]
  %v850 = vld [vmem:[%s9 + $0x5c] sm:$0xf]
  %v851 = vld [vmem:[%s10] sm:$0x1]
  %v853 = vlaneseq
  %v854 = vshrl.u32 %v853, 7
  %v855 = vsub.s32 0, %v854
  %v856 = vrot.slane %v851, %v855
  %v882 = vunpack.c.l.b16 %v827
  %v883 = vunpack.c.l.b16 %v828
  %v884 = vunpack.c.l.b16 %v829
  %v885 = vunpack.c.l.b16 %v830
  %v886 = vunpack.c.l.b16 %v831
  %v887 = vunpack.c.l.b16 %v832
  %v888 = vunpack.c.l.b16 %v833
  %v889 = vunpack.c.l.b16 %v834
  %v890 = vunpack.c.l.b16 %v835
  %v891 = vunpack.c.l.b16 %v836
  %v892 = vunpack.c.l.b16 %v837
  %v893 = vunpack.c.l.b16 %v838
  %v894 = vunpack.c.l.b16 %v839
  %v895 = vunpack.c.l.b16 %v840
  %v896 = vunpack.c.l.b16 %v841
  %v897 = vunpack.c.l.b16 %v842
  %v898 = vunpack.c.l.b16 %v843
  %v899 = vunpack.c.l.b16 %v844
  %v900 = vunpack.c.l.b16 %v845
  %v901 = vunpack.c.l.b16 %v846
  %v902 = vunpack.c.l.b16 %v847
  %v903 = vunpack.c.l.b16 %v848
  %v904 = vunpack.c.l.b16 %v849
  %v905 = vunpack.c.l.b16 %v850
  %v906 = vpack.c.b16 %v883, %v882
  %v907 = vpack.c.b16 %v885, %v884
  %v908 = vpack.c.b16 %v887, %v886
  %v909 = vpack.c.b16 %v889, %v888
  %v910 = vpack.c.b16 %v891, %v890
  %v911 = vpack.c.b16 %v893, %v892
  %v912 = vpack.c.b16 %v895, %v894
  %v913 = vpack.c.b16 %v897, %v896
  %v914 = vpack.c.b16 %v899, %v898
  %v915 = vpack.c.b16 %v901, %v900
  %v916 = vpack.c.b16 %v903, %v902
  %v917 = vpack.c.b16 %v905, %v904
  %vm930 = vcmask 523264
  %v932 = vsel %vm930, %v826, 0
  %934 = vmatprep.subr.bf16.mxu0 0
  %935 = vmatpush1.bf16.msra.mxu0 %v906
  %936 = vmatprep.subr.bf16.mxu0 0
  %937 = vmatpush1.bf16.msra.mxu0 %v907
  %938 = vmatprep.subr.bf16.mxu0 0
  %939 = vmatpush1.bf16.msra.mxu0 %v908
  %940 = vmatprep.subr.bf16.mxu0 0
  %941 = vmatpush1.bf16.msra.mxu0 %v909
  %942 = vmatprep.subr.bf16.mxu0 0
  %943 = vmatpush1.bf16.msra.mxu0 %v910
  %944 = vmatprep.subr.bf16.mxu0 0
  %945 = vmatpush1.bf16.msra.mxu0 %v911
  %946 = vmatprep.subr.bf16.mxu0 0
  %947 = vmatpush1.bf16.msra.mxu0 %v912
  %948 = vmatprep.subr.bf16.mxu0 0
  %949 = vmatpush1.bf16.msra.mxu0 %v913
  %950 = vmatprep.subr.bf16.mxu0 0
  %951 = vmatpush1.bf16.msra.mxu0 %v914
  %952 = vmatprep.subr.bf16.mxu0 0
  %953 = vmatpush1.bf16.msra.mxu0 %v915
  %954 = vmatprep.subr.bf16.mxu0 0
  %955 = vmatpush1.bf16.msra.mxu0 %v916
  %956 = vmatprep.subr.bf16.mxu0 0
  %957 = vmatpush1.bf16.msra.mxu0 %v917
  %958 = vmatprep.subr.bf16.mxu0 0
  %959 = vmatpush1.bf16.msra.mxu0 0
  %960 = vmatprep.subr.bf16.mxu0 0
  %961 = vmatpush1.bf16.msra.mxu0 0
  %962 = vmatprep.subr.bf16.mxu0 0
  %963 = vmatpush1.bf16.msra.mxu0 0
  %964 = vmatprep.subr.bf16.mxu0 0
  %965 = vmatpush1.bf16.msra.mxu0 0
  %966 = vmatprep.mubr.bf16.mxu0 %v932
  %967 = vmatmul.mubr.bf16.gmra.mrb[0].mxu0 %v825
  %v968 = vpop.f32.mrb[0].mxu0
  %v969 = vadd.f32 %v856, %v968
  %v970 = vpop.f32.mrb[0].mxu0
  %v971 = vpop.f32.mrb[0].mxu0
  %v972 = vpop.f32.mrb[0].mxu0
  %973 = vdwg.mxu0
  %v974 = vpack.c.bf16 %v812, %v812
  %v975 = vld [vmem:[%s11] sm:$0xf]
  %v976 = vld [vmem:[%s11 + $0x4] sm:$0xf]
  %v977 = vld [vmem:[%s11 + $0x8] sm:$0xf]
  %v978 = vld [vmem:[%s11 + $0xc] sm:$0xf]
  %v979 = vld [vmem:[%s11 + $0x10] sm:$0xf]
  %v980 = vld [vmem:[%s11 + $0x14] sm:$0xf]
  %v981 = vld [vmem:[%s11 + $0x18] sm:$0xf]
  %v982 = vld [vmem:[%s11 + $0x1c] sm:$0xf]
  %v983 = vpack.c.bf16 %v798, %v798
  %v984 = vld [vmem:[%s11 + $0x20] sm:$0xf]
  %v985 = vld [vmem:[%s11 + $0x24] sm:$0xf]
  %v986 = vld [vmem:[%s11 + $0x28] sm:$0xf]
  %v987 = vld [vmem:[%s11 + $0x2c] sm:$0xf]
  %v988 = vld [vmem:[%s11 + $0x30] sm:$0xf]
  %v989 = vld [vmem:[%s11 + $0x34] sm:$0xf]
  %v990 = vld [vmem:[%s11 + $0x38] sm:$0xf]
  %v991 = vld [vmem:[%s11 + $0x3c] sm:$0xf]
  %v1000 = vunpack.c.l.b16 %v984
  %v1001 = vunpack.c.l.b16 %v985
  %v1002 = vunpack.c.l.b16 %v986
  %v1003 = vunpack.c.l.b16 %v987
  %v1004 = vunpack.c.l.b16 %v988
  %v1005 = vunpack.c.l.b16 %v989
  %v1006 = vunpack.c.l.b16 %v990
  %v1007 = vunpack.c.l.b16 %v991
  %v1008 = vpack.c.b16 %v1001, %v1000
  %v1009 = vpack.c.b16 %v1003, %v1002
  %v1010 = vpack.c.b16 %v1005, %v1004
  %v1011 = vpack.c.b16 %v1007, %v1006
  %v1017 = vsel %vm930, %v983, 0
  %1019 = vmatprep.subr.bf16.mxu0 0
  %1020 = vmatpush1.bf16.msra.mxu0 %v1008
  %1021 = vmatprep.subr.bf16.mxu0 0
  %1022 = vmatpush1.bf16.msra.mxu0 %v1009
  %1023 = vmatprep.subr.bf16.mxu0 0
  %1024 = vmatpush1.bf16.msra.mxu0 %v1010
  %1025 = vmatprep.subr.bf16.mxu0 0
  %1026 = vmatpush1.bf16.msra.mxu0 %v1011
  %1027 = vmatprep.subr.bf16.mxu0 0
  %1028 = vmatpush1.bf16.msra.mxu0 0
  %1029 = vmatprep.subr.bf16.mxu0 0
  %1030 = vmatpush1.bf16.msra.mxu0 0
  %1031 = vmatprep.subr.bf16.mxu0 0
  %1032 = vmatpush1.bf16.msra.mxu0 0
  %1033 = vmatprep.subr.bf16.mxu0 0
  %1034 = vmatpush1.bf16.msra.mxu0 0
  %1035 = vmatprep.subr.bf16.mxu0 0
  %1036 = vmatpush1.bf16.msra.mxu0 0
  %1037 = vmatprep.subr.bf16.mxu0 0
  %1038 = vmatpush1.bf16.msra.mxu0 0
  %1039 = vmatprep.subr.bf16.mxu0 0
  %1040 = vmatpush1.bf16.msra.mxu0 0
  %1041 = vmatprep.subr.bf16.mxu0 0
  %1042 = vmatpush1.bf16.msra.mxu0 0
  %1043 = vmatprep.subr.bf16.mxu0 0
  %1044 = vmatpush1.bf16.msra.mxu0 0
  %1045 = vmatprep.subr.bf16.mxu0 0
  %1046 = vmatpush1.bf16.msra.mxu0 0
  %1047 = vmatprep.subr.bf16.mxu0 0
  %1048 = vmatpush1.bf16.msra.mxu0 0
  %1049 = vmatprep.subr.bf16.mxu0 0
  %1050 = vmatpush1.bf16.msra.mxu0 0
  %1051 = vmatprep.mubr.bf16.mxu0 0
  %1052 = vmatmul.mubr.bf16.gmra.mrb[0].mxu0 %v1017
  %v1053 = vpop.f32.mrb[0].mxu0
  %v1054 = vadd.f32 0.0, %v1053
  %v1055 = vpop.f32.mrb[0].mxu0
  %v1056 = vpop.f32.mrb[0].mxu0
  %v1057 = vpop.f32.mrb[0].mxu0
  %1058 = vdwg.mxu0
  %v1067 = vunpack.c.l.b16 %v975
  %v1068 = vunpack.c.l.b16 %v976
  %v1069 = vunpack.c.l.b16 %v977
  %v1070 = vunpack.c.l.b16 %v978
  %v1071 = vunpack.c.l.b16 %v979
  %v1072 = vunpack.c.l.b16 %v980
  %v1073 = vunpack.c.l.b16 %v981
  %v1074 = vunpack.c.l.b16 %v982
  %v1075 = vpack.c.b16 %v1068, %v1067
  %v1076 = vpack.c.b16 %v1070, %v1069
  %v1077 = vpack.c.b16 %v1072, %v1071
  %v1078 = vpack.c.b16 %v1074, %v1073
  %v1084 = vsel %vm930, %v974, 0
  %1086 = vmatprep.subr.bf16.mxu0 0
  %1087 = vmatpush1.bf16.msra.mxu0 %v1075
  %1088 = vmatprep.subr.bf16.mxu0 0
  %1089 = vmatpush1.bf16.msra.mxu0 %v1076
  %1090 = vmatprep.subr.bf16.mxu0 0
  %1091 = vmatpush1.bf16.msra.mxu0 %v1077
  %1092 = vmatprep.subr.bf16.mxu0 0
  %1093 = vmatpush1.bf16.msra.mxu0 %v1078
  %1094 = vmatprep.subr.bf16.mxu0 0
  %1095 = vmatpush1.bf16.msra.mxu0 0
  %1096 = vmatprep.subr.bf16.mxu0 0
  %1097 = vmatpush1.bf16.msra.mxu0 0
  %1098 = vmatprep.subr.bf16.mxu0 0
  %1099 = vmatpush1.bf16.msra.mxu0 0
  %1100 = vmatprep.subr.bf16.mxu0 0
  %1101 = vmatpush1.bf16.msra.mxu0 0
  %1102 = vmatprep.subr.bf16.mxu0 0
  %1103 = vmatpush1.bf16.msra.mxu0 0
  %1104 = vmatprep.subr.bf16.mxu0 0
  %1105 = vmatpush1.bf16.msra.mxu0 0
  %1106 = vmatprep.subr.bf16.mxu0 0
  %1107 = vmatpush1.bf16.msra.mxu0 0
  %1108 = vmatprep.subr.bf16.mxu0 0
  %1109 = vmatpush1.bf16.msra.mxu0 0
  %1110 = vmatprep.subr.bf16.mxu0 0
  %1111 = vmatpush1.bf16.msra.mxu0 0
  %1112 = vmatprep.subr.bf16.mxu0 0
  %1113 = vmatpush1.bf16.msra.mxu0 0
  %1114 = vmatprep.subr.bf16.mxu0 0
  %1115 = vmatpush1.bf16.msra.mxu0 0
  %1116 = vmatprep.subr.bf16.mxu0 0
  %1117 = vmatpush1.bf16.msra.mxu0 0
  %1118 = vmatprep.mubr.bf16.mxu0 0
  %1119 = vmatmul.mubr.bf16.gmra.mrb[0].mxu0 %v1084
  %v1120 = vpop.f32.mrb[0].mxu0
  %v1121 = vadd.f32 %v1054, %v1120
  %v1122 = vpop.f32.mrb[0].mxu0
  %v1123 = vpop.f32.mrb[0].mxu0
  %v1124 = vpop.f32.mrb[0].mxu0
  %1125 = vdwg.mxu0
  %v1126 = vpack.c.bf16 %v969, %v969
  %v1127 = vld [vmem:[%s11 + $0x40] sm:$0xf]
  %v1128 = vld [vmem:[%s11 + $0x44] sm:$0xf]
  %v1129 = vld [vmem:[%s11 + $0x48] sm:$0xf]
  %v1130 = vld [vmem:[%s11 + $0x4c] sm:$0xf]
  %v1135 = vunpack.c.l.b16 %v1127
  %v1136 = vunpack.c.l.b16 %v1128
  %v1137 = vunpack.c.l.b16 %v1129
  %v1138 = vunpack.c.l.b16 %v1130
  %v1139 = vpack.c.b16 %v1136, %v1135
  %v1140 = vpack.c.b16 %v1138, %v1137
  %vm1143 = vcmask 261120
  %v1145 = vsel %vm1143, %v1126, 0
  %1147 = vmatprep.subr.bf16.mxu0 0
  %1148 = vmatpush1.bf16.msra.mxu0 %v1139
  %1149 = vmatprep.subr.bf16.mxu0 0
  %1150 = vmatpush1.bf16.msra.mxu0 %v1140
  %1151 = vmatprep.subr.bf16.mxu0 0
  %1152 = vmatpush1.bf16.msra.mxu0 0
  %1153 = vmatprep.subr.bf16.mxu0 0
  %1154 = vmatpush1.bf16.msra.mxu0 0
  %1155 = vmatprep.subr.bf16.mxu0 0
  %1156 = vmatpush1.bf16.msra.mxu0 0
  %1157 = vmatprep.subr.bf16.mxu0 0
  %1158 = vmatpush1.bf16.msra.mxu0 0
  %1159 = vmatprep.subr.bf16.mxu0 0
  %1160 = vmatpush1.bf16.msra.mxu0 0
  %1161 = vmatprep.subr.bf16.mxu0 0
  %1162 = vmatpush1.bf16.msra.mxu0 0
  %1163 = vmatprep.subr.bf16.mxu0 0
  %1164 = vmatpush1.bf16.msra.mxu0 0
  %1165 = vmatprep.subr.bf16.mxu0 0
  %1166 = vmatpush1.bf16.msra.mxu0 0
  %1167 = vmatprep.subr.bf16.mxu0 0
  %1168 = vmatpush1.bf16.msra.mxu0 0
  %1169 = vmatprep.subr.bf16.mxu0 0
  %1170 = vmatpush1.bf16.msra.mxu0 0
  %1171 = vmatprep.subr.bf16.mxu0 0
  %1172 = vmatpush1.bf16.msra.mxu0 0
  %1173 = vmatprep.subr.bf16.mxu0 0
  %1174 = vmatpush1.bf16.msra.mxu0 0
  %1175 = vmatprep.subr.bf16.mxu0 0
  %1176 = vmatpush1.bf16.msra.mxu0 0
  %1177 = vmatprep.subr.bf16.mxu0 0
  %1178 = vmatpush1.bf16.msra.mxu0 0
  %1179 = vmatprep.mubr.bf16.mxu0 0
  %1180 = vmatmul.mubr.bf16.gmra.mrb[0].mxu0 %v1145
  %v1181 = vpop.f32.mrb[0].mxu0
  %v1182 = vadd.f32 0.0, %v1181
  %v1183 = vpop.f32.mrb[0].mxu0
  %v1184 = vpop.f32.mrb[0].mxu0
  %v1185 = vpop.f32.mrb[0].mxu0
  %1186 = vdwg.mxu0
  %v1187 = vadd.f32 %v1121, %v1182
  %v1188 = vld [vmem:[%s8] sm:$0x3]
  %v1189 = vpack.c.bf16 %v1188, %v1188
  %v1190 = vld [vmem:[%s11 + $0x50] sm:$0xf]
  %v1191 = vld [vmem:[%s11 + $0x54] sm:$0xf]
  %v1192 = vld [vmem:[%s11 + $0x58] sm:$0xf]
  %v1193 = vld [vmem:[%s11 + $0x5c] sm:$0xf]
  %v1198 = vunpack.c.l.b16 %v1190
  %v1199 = vunpack.c.l.b16 %v1191
  %v1200 = vunpack.c.l.b16 %v1192
  %v1201 = vunpack.c.l.b16 %v1193
  %v1202 = vpack.c.b16 %v1199, %v1198
  %v1203 = vpack.c.b16 %v1201, %v1200
  %v1207 = vsel %vm1143, %v1189, 0
  %1209 = vmatprep.subr.bf16.mxu0 0
  %1210 = vmatpush1.bf16.msra.mxu0 %v1202
  %1211 = vmatprep.subr.bf16.mxu0 0
  %1212 = vmatpush1.bf16.msra.mxu0 %v1203
  %1213 = vmatprep.subr.bf16.mxu0 0
  %1214 = vmatpush1.bf16.msra.mxu0 0
  %1215 = vmatprep.subr.bf16.mxu0 0
  %1216 = vmatpush1.bf16.msra.mxu0 0
  %1217 = vmatprep.subr.bf16.mxu0 0
  %1218 = vmatpush1.bf16.msra.mxu0 0
  %1219 = vmatprep.subr.bf16.mxu0 0
  %1220 = vmatpush1.bf16.msra.mxu0 0
  %1221 = vmatprep.subr.bf16.mxu0 0
  %1222 = vmatpush1.bf16.msra.mxu0 0
  %1223 = vmatprep.subr.bf16.mxu0 0
  %1224 = vmatpush1.bf16.msra.mxu0 0
  %1225 = vmatprep.subr.bf16.mxu0 0
  %1226 = vmatpush1.bf16.msra.mxu0 0
  %1227 = vmatprep.subr.bf16.mxu0 0
  %1228 = vmatpush1.bf16.msra.mxu0 0
  %1229 = vmatprep.subr.bf16.mxu0 0
  %1230 = vmatpush1.bf16.msra.mxu0 0
  %1231 = vmatprep.subr.bf16.mxu0 0
  %1232 = vmatpush1.bf16.msra.mxu0 0
  %1233 = vmatprep.subr.bf16.mxu0 0
  %1234 = vmatpush1.bf16.msra.mxu0 0
  %1235 = vmatprep.subr.bf16.mxu0 0
  %1236 = vmatpush1.bf16.msra.mxu0 0
  %1237 = vmatprep.subr.bf16.mxu0 0
  %1238 = vmatpush1.bf16.msra.mxu0 0
  %1239 = vmatprep.subr.bf16.mxu0 0
  %1240 = vmatpush1.bf16.msra.mxu0 0
  %1241 = vmatprep.mubr.bf16.mxu0 0
  %1242 = vmatmul.mubr.bf16.gmra.mrb[0].mxu0 %v1207
  %v1243 = vpop.f32.mrb[0].mxu0
  %v1244 = vadd.f32 0.0, %v1243
  %v1245 = vpop.f32.mrb[0].mxu0
  %v1246 = vpop.f32.mrb[0].mxu0
  %v1247 = vpop.f32.mrb[0].mxu0
  %1248 = vdwg.mxu0
  %v1249 = vadd.f32 %v1187, %v1244
  %v1250 = vld [vmem:[%s12] sm:$0x1]
  %v1252 = vlaneseq
  %v1253 = vshrl.u32 %v1252, 7
  %v1254 = vsub.s32 0, %v1253
  %v1255 = vrot.slane %v1250, %v1254
  %v1257 = vadd.f32 %v1249, %v1255
  %v1258 = vxor.u32 %v1257, 2147483648
  %v1259 = vmul.f32 %v1258, 1.442695
  %v1260 = vpow.pop %v1259
  %v1261 = vadd.f32 %v1260, 1.0
  %v1262 = vrcp.pop %v1261
  %v1263 = vmul.f32 1.0, %v1262
  %v1264 = vmul.f32 %v1257, %v1263
  %v1265 = vpack.c.bf16 %v1264, %v1264
  %v1266 = vld [vmem:[%s13] sm:$0xf]
  %v1267 = vld [vmem:[%s13 + $0x4] sm:$0xf]
  %v1268 = vld [vmem:[%s13 + $0x8] sm:$0xf]
  %v1269 = vld [vmem:[%s13 + $0xc] sm:$0xf]
  %v1270 = vld [vmem:[%s13 + $0x10] sm:$0xf]
  %v1271 = vld [vmem:[%s13 + $0x14] sm:$0xf]
  %v1272 = vld [vmem:[%s13 + $0x18] sm:$0xf]
  %v1273 = vld [vmem:[%s13 + $0x1c] sm:$0xf]
  %v1274 = vld [vmem:[%s13 + $0x20] sm:$0xf]
  %v1275 = vld [vmem:[%s13 + $0x24] sm:$0xf]
  %v1276 = vld [vmem:[%s13 + $0x28] sm:$0xf]
  %v1277 = vld [vmem:[%s13 + $0x2c] sm:$0xf]
  %v1278 = vld [vmem:[%s13 + $0x30] sm:$0xf]
  %v1279 = vld [vmem:[%s13 + $0x34] sm:$0xf]
  %v1280 = vld [vmem:[%s13 + $0x38] sm:$0xf]
  %v1281 = vld [vmem:[%s13 + $0x3c] sm:$0xf]
  %v1282 = vld [vmem:[%s14] sm:$0x1]
  %v1284 = vlaneseq
  %v1285 = vshrl.u32 %v1284, 7
  %v1286 = vsub.s32 0, %v1285
  %v1287 = vrot.slane %v1282, %v1286
  %v1305 = vunpack.c.l.b16 %v1266
  %v1306 = vunpack.c.l.b16 %v1267
  %v1307 = vunpack.c.l.b16 %v1268
  %v1308 = vunpack.c.l.b16 %v1269
  %v1309 = vunpack.c.l.b16 %v1270
  %v1310 = vunpack.c.l.b16 %v1271
  %v1311 = vunpack.c.l.b16 %v1272
  %v1312 = vunpack.c.l.b16 %v1273
  %v1313 = vunpack.c.l.b16 %v1274
  %v1314 = vunpack.c.l.b16 %v1275
  %v1315 = vunpack.c.l.b16 %v1276
  %v1316 = vunpack.c.l.b16 %v1277
  %v1317 = vunpack.c.l.b16 %v1278
  %v1318 = vunpack.c.l.b16 %v1279
  %v1319 = vunpack.c.l.b16 %v1280
  %v1320 = vunpack.c.l.b16 %v1281
  %v1321 = vpack.c.b16 %v1306, %v1305
  %v1322 = vpack.c.b16 %v1308, %v1307
  %v1323 = vpack.c.b16 %v1310, %v1309
  %v1324 = vpack.c.b16 %v1312, %v1311
  %v1325 = vpack.c.b16 %v1314, %v1313
  %v1326 = vpack.c.b16 %v1316, %v1315
  %v1327 = vpack.c.b16 %v1318, %v1317
  %v1328 = vpack.c.b16 %v1320, %v1319
  %1337 = vmatprep.subr.bf16.mxu0 0
  %1338 = vmatpush1.bf16.msra.mxu0 %v1321
  %1339 = vmatprep.subr.bf16.mxu0 0
  %1340 = vmatpush1.bf16.msra.mxu0 %v1322
  %1341 = vmatprep.subr.bf16.mxu0 0
  %1342 = vmatpush1.bf16.msra.mxu0 %v1323
  %1343 = vmatprep.subr.bf16.mxu0 0
  %1344 = vmatpush1.bf16.msra.mxu0 %v1324
  %1345 = vmatprep.subr.bf16.mxu0 0
  %1346 = vmatpush1.bf16.msra.mxu0 %v1325
  %1347 = vmatprep.subr.bf16.mxu0 0
  %1348 = vmatpush1.bf16.msra.mxu0 %v1326
  %1349 = vmatprep.subr.bf16.mxu0 0
  %1350 = vmatpush1.bf16.msra.mxu0 %v1327
  %1351 = vmatprep.subr.bf16.mxu0 0
  %1352 = vmatpush1.bf16.msra.mxu0 %v1328
  %1353 = vmatprep.subr.bf16.mxu0 0
  %1354 = vmatpush1.bf16.msra.mxu0 0
  %1355 = vmatprep.subr.bf16.mxu0 0
  %1356 = vmatpush1.bf16.msra.mxu0 0
  %1357 = vmatprep.subr.bf16.mxu0 0
  %1358 = vmatpush1.bf16.msra.mxu0 0
  %1359 = vmatprep.subr.bf16.mxu0 0
  %1360 = vmatpush1.bf16.msra.mxu0 0
  %1361 = vmatprep.subr.bf16.mxu0 0
  %1362 = vmatpush1.bf16.msra.mxu0 0
  %1363 = vmatprep.subr.bf16.mxu0 0
  %1364 = vmatpush1.bf16.msra.mxu0 0
  %1365 = vmatprep.subr.bf16.mxu0 0
  %1366 = vmatpush1.bf16.msra.mxu0 0
  %1367 = vmatprep.subr.bf16.mxu0 0
  %1368 = vmatpush1.bf16.msra.mxu0 0
  %1369 = vmatprep.mubr.bf16.mxu0 0
  %1370 = vmatmul.mubr.bf16.gmra.mrb[0].mxu0 %v1265
  %v1371 = vpop.f32.mrb[0].mxu0
  %v1372 = vadd.f32 %v1287, %v1371
  %v1373 = vpop.f32.mrb[0].mxu0
  %v1374 = vpop.f32.mrb[0].mxu0
  %v1375 = vpop.f32.mrb[0].mxu0
  %1376 = vdwg.mxu0
  %v1377 = vld [vmem:[%s15] sm:$0x3]
  %1379 = vset.pattern.permute.xlu0 4
  %1380 = vperm.xlu0 %1379, %v1377
  %v1381 = vpop.permute.xlu0 %1380
  %v1383 = vmul.f32 %v1381, %v621
  %1384 = vset.pattern.permute.xlu0 5
  %1385 = vperm.xlu0 %1384, %v1377
  %v1386 = vpop.permute.xlu0 %1385
  %v1388 = vmul.f32 %v1386, %v812
  %v1389 = vadd.f32 %v1383, %v1388
  %1390 = vset.pattern.permute.xlu0 2
  %1391 = vperm.xlu0 %1390, %v1377
  %v1392 = vpop.permute.xlu0 %1391
  %v1394 = vmul.f32 %v1392, %v812
  %1395 = vset.pattern.permute.xlu0 3
  %1396 = vperm.xlu0 %1395, %v1377
  %v1397 = vpop.permute.xlu0 %1396
  %v1399 = vmul.f32 %v1397, %v1372
  %v1400 = vsub.f32 %v1394, %v1399
  %v1401 = vmul.f32 %v1381, %v1400
  %v1402 = vadd.f32 %v1401, %v1388
  %v1403 = vadd.f32 %v1372, 1.0
  %v1404 = vmul.f32 %v1403, 0.5
  %1405 = vset.pattern.permute.xlu0 7
  %1406 = vperm.xlu0 %1405, %v1377
  %v1407 = vpop.permute.xlu0 %1406
  %v1409 = vmul.f32 %v1404, %v1407
  %v1410 = vsub.f32 1.0, %v1404
  %1411 = vset.pattern.permute.xlu0 6
  %1412 = vperm.xlu0 %1411, %v1377
  %v1413 = vpop.permute.xlu0 %1412
  %v1415 = vmul.f32 %v1410, %v1413
  %v1416 = vadd.f32 %v1409, %v1415
  %v1417 = vmul.f32 %v1416, -0.5
  %v1418 = vmul.f32 %v1417, 1.442695
  %v1419 = vpow.pop %v1418
  %v1420 = vmul.f32 %v1419, %v1419
  %v1421 = vmul.f32 %v1377, 1.442695
  %v1422 = vpow.pop %v1421
  %v1423 = vadd.f32 %v1416, -1.0
  %v1424 = vsub.f32 %v1423, %v1413
  %1426 = vset.pattern.permute.xlu0 6
  %1427 = vperm.xlu0 %1426, %v1422
  %v1428 = vpop.permute.xlu0 %1427
  %v1430 = vmul.f32 %v1428, %v1420
  %v1431 = vadd.f32 %v1424, %v1430
  %v1432 = vsub.f32 %v1389, %v1402
  %v1433 = vmul.f32 %v1432, %v1432
  %1435 = vrot.lane.b32.xlu0 %v1420, 64
  %v1436 = vpop.permute.xlu0 %1435
  %v1438 = vmul.f32 %v1433, %v1436
  %1440 = vrot.lane.b32.xlu0 %v1438, 64
  %v1441 = vpop.permute.xlu0 %1440
  %v1443 = vadd.f32 %v1431, %v1441
  %v1444 = vmul.f32 %v1443, 0.5
  %1446 = vrot.lane.b32.xlu0 %v1444, 64
  %v1447 = vpop.permute.xlu0 %1446
  %vm1449 = vcmask 517120
  %v1450 = vsel %vm1449, %v1447, 0.0
  %1451 = vadd.xlane.f32.xlu0 %v1450
  %v1452 = vpop.xlane.xlu0 %1451
  %v1453 = vrcp.pop 64.0
  %v1454 = vmul.f32 %v1452, %v1453
  %v1455 = vmul.f32 %v1454, 1.442695
  %v1456 = vsub.f32 %v621, %v1402
  %v1457 = vadd.f32 %v1456, 0.003921569
  %1459 = vrot.lane.b32.xlu0 %v1457, 64
  %v1460 = vpop.permute.xlu0 %1459
  %v1462 = vmul.f32 %v1419, %v1460
  %v1463 = vsub.f32 %v1456, 0.003921569
  %1465 = vrot.lane.b32.xlu0 %v1463, 64
  %v1466 = vpop.permute.xlu0 %1465
  %v1468 = vmul.f32 %v1419, %v1466
  %v1469 = vmul.f32 %v1462, %v1462
  %v1470 = vmul.f32 %v1462, %v1469
  %v1471 = vmul.f32 %v1470, 0.044715
  %v1472 = vadd.f32 %v1462, %v1471
  %v1473 = vmul.f32 %v1472, 0.7978846
  %v1474 = vtanh.pop %v1473
  %v1475 = vadd.f32 %v1474, 1.0
  %v1476 = vmul.f32 %v1475, 0.5
  %v1477 = vmul.f32 %v1468, %v1468
  %v1478 = vmul.f32 %v1468, %v1477
  %v1479 = vmul.f32 %v1478, 0.044715
  %v1480 = vadd.f32 %v1468, %v1479
  %v1481 = vmul.f32 %v1480, 0.7978846
  %v1482 = vtanh.pop %v1481
  %v1483 = vadd.f32 %v1482, 1.0
  %v1484 = vmul.f32 %v1483, 0.5
  %v1485 = vmax.f32 %v1476, 1e-12
  %v1486 = vlog2.pop %v1485
  %v1487 = vmul.f32 %v1486, 0.6931472
  %v1488 = vsub.f32 1.0, %v1484
  %v1489 = vmax.f32 %v1488, 1e-12
  %v1490 = vlog2.pop %v1489
  %v1491 = vmul.f32 %v1490, 0.6931472
  %v1492 = vsub.f32 %v1476, %v1484
  %vm1493 = vcmp.lt.f32.partialorder %v621, -0.999
  %vm1494 = vcmp.gt.f32.partialorder %v621, 0.999
  %v1495 = vmax.f32 %v1492, 1e-12
  %v1496 = vlog2.pop %v1495
  %v1497 = vmul.f32 %v1496, 0.6931472
  %1499 = vrot.lane.b32.xlu0 %v1491, 64
  %v1500 = vpop.permute.xlu0 %1499
  %1503 = vrot.lane.b32.xlu0 %v1497, 64
  %v1504 = vpop.permute.xlu0 %1503
  %v1506 = vsel %vm1494, %v1500, %v1504
  %1508 = vrot.lane.b32.xlu0 %v1487, 64
  %v1509 = vpop.permute.xlu0 %1508
  %v1511 = vsel %vm1493, %v1509, %v1506
  %v1512 = vsel %vm1449, %v1511, 0.0
  %1513 = vadd.xlane.f32.xlu0 %v1512
  %v1514 = vpop.xlane.xlu0 %1513
  %v1515 = vmul.f32 %v1514, %v1453
  %v1516 = vsub.f32 0.0, %v1515
  %v1517 = vmul.f32 %v1516, 1.442695
  %vm1518 = vcmp.gt.f32.partialorder %v1377, 0.5
  %v1519 = vsel %vm1518, %v1517, %v1455
  %v1520 = vmul.f32 %v1519, 1000.0
  %1522 = vrot.lane.b32.xlu0 %v1520, 120
  %v1523 = vpop.permute.xlu0 %1522
  %vm1525 = vcmask 1024
  %v1526 = vsel %vm1525, %v1523, 0.0
  %1527 = vadd.xlane.f32.xlu0 %v1526
  %v1528 = vpop.xlane.xlu0 %1527
  %v1529 = vrot.slane %v1528, 4
  %v1530 = vadd.f32 %v1528, %v1529
  %v1531 = vrot.slane %v1530, 2
  %v1532 = vadd.f32 %v1530, %v1531
  %v1533 = vrot.slane %v1532, 1
  %v1534 = vadd.f32 %v1532, %v1533
  %s1535 = vtos %v1534
  %s1536 = smul.f32 %s1535, 0.5
  %v1537 = vstv %s1536
  %v1538 = vadd.f32 %v1537, 0.0
  %1539 = vst [vmem:[%s16] sm:$0xff] %v1538
  // Predicated region
  $region66: #{diffusion_forward.1} parent=0 // pred_check
    _
  $region67: #{diffusion_forward.1} parent=0 // pred_check_branch
    %1541 = sbr.rel (0) target = $region69
  $region68: #{diffusion_forward.1} parent=0 // pred_region
    _
  $region69: #{diffusion_forward.1} parent=0 // pred_fallthru
    _
  // Predicated region
  $region70: #{diffusion_forward.1} parent=0 // pred_check
    _
  $region71: #{diffusion_forward.1} parent=0 // pred_check_branch
    %1543 = sbr.rel (0) target = $region73
  $region72: #{diffusion_forward.1} parent=0 // pred_region
    _
  $region73: #{diffusion_forward.1} parent=0 // pred_fallthru
    _

</llo_original>
